<compile_context>
chip_gen: v5e
topology: v5e:2x2
jax: 0.10.0
libtpu: 0.0.40
codegen_flags: <defaults>
</compile_context>

<pallas_src>
import jax
import jax.numpy as jnp
from jax.experimental import pallas as pl
from jax.experimental.pallas import tpu as pltpu


def smn_kernel(x_ref,      # VMEM (BT, S, H) bf16 -- embedded tokens (gathered in XLA)
               w_in_ref,   # VMEM (H, 8H)   bf16  -- fused/interleaved input weights (pre-T)
               whh_ref,    # VMEM (2H, 8H)  bf16  -- block-diagonal recurrent weights (pre-T)
               bias_ref,   # VMEM (1, 8H)   f32   -- fused b_ih+b_hh for both dirs
               w1t_ref,    # VMEM (2H, H)   bf16  -- encoder Linear weight, pre-T
               b1_ref,     # VMEM (1, H)    f32
               wd_ref,     # VMEM (1, H)    f32   -- classifier w2[1]-w2[0]
               bd_ref,     # VMEM (1, 1)    f32   -- classifier b2[1]-b2[0]
               out_ref):   # VMEM (BT, 1)   f32   -- softmax(logits)[:, 1]
    BT, S, H = x_ref.shape
    G = 2 * H                    # fused fwd|bwd hidden width
    GW = 4 * G                   # fused gate width (8H)

    # ---- 1) ONE input-projection matmul for both directions, all steps ----
    x2d = x_ref[...].reshape(BT * S, H)                           # bf16
    xg = jnp.dot(x2d, w_in_ref[...], preferred_element_type=jnp.float32)
    xg = (xg + bias_ref[...]).reshape(BT, S, GW)                  # f32 (BT, S, 8H)

    whh = whh_ref[...]                                            # bf16, hoisted

    # Lane mask selecting the forward half of every fused gate block
    # (interleaved per-gate layout [i_f i_b | f_f f_b | g_f g_b | o_f o_b]).
    lane = jax.lax.broadcasted_iota(jnp.int32, (1, GW), 1)
    fwd_mask = (lane % G) < H

    # ---- 2) hoist the time-reversal select off the serialized chain -------
    # fwd lanes read time k, bwd lanes read time S-1-k; precompute all steps
    # (independent of h/c, so they overlap with the projection matmul).
    gx_steps = [jnp.where(fwd_mask, xg[:, k, :], xg[:, S - 1 - k, :])
                for k in range(S)]

    # ---- 3) fused bidirectional recurrence: ONE matmul per step -----------
    # Hidden/cell state and all per-step outputs stay in registers.
    h = jnp.zeros((BT, G), jnp.float32)
    c = jnp.zeros((BT, G), jnp.float32)
    h_fwd = [None] * S
    h_bwd = [None] * S
    for k in range(S):                                            # static unroll, S small
        g = gx_steps[k] + jnp.dot(h.astype(jnp.bfloat16), whh,
                                  preferred_element_type=jnp.float32)
        sg = jax.nn.sigmoid(g)                                    # full-width EUP
        i_g = sg[:, 0 * G:1 * G]
        f_g = sg[:, 1 * G:2 * G]
        o_g = sg[:, 3 * G:4 * G]
        g_g = jnp.tanh(g[:, 2 * G:3 * G])
        c = f_g * c + i_g * g_g
        h = o_g * jnp.tanh(c)
        h_fwd[k] = h[:, 0:H]                                      # forward dir  -> time k
        h_bwd[S - 1 - k] = h[:, H:G]                              # backward dir -> time S-1-k

    # ---- 4) encoder tail: ReLU -> Linear(2H->H) -> ReLU -> max over seq ---
    # Assemble the encoder input ONCE after the loop (time-major row order).
    h_fwd_all = jnp.concatenate(h_fwd, axis=0)                    # (S*BT, H)
    h_bwd_all = jnp.concatenate(h_bwd, axis=0)                    # (S*BT, H)
    enc = jnp.maximum(jnp.concatenate([h_fwd_all, h_bwd_all], axis=-1), 0.0)
    lin = jnp.dot(enc.astype(jnp.bfloat16), w1t_ref[...],
                  preferred_element_type=jnp.float32) + b1_ref[...]
    lin = jnp.maximum(lin, 0.0).reshape(S, BT, H)
    pooled = jnp.max(lin, axis=0)                                 # (BT, H) max over sequence

    # ---- 5) classifier: softmax(Wx+b)[:,1] == sigmoid((w1-w0)·x + b1-b0) --
    logit = jnp.sum(pooled * wd_ref[...], axis=-1, keepdims=True) + bd_ref[...]
    out_ref[...] = jax.nn.sigmoid(logit)                          # (BT, 1)


def pack_params(params):
    """Convert PyTorch-convention params into the fused kernel layout (host-side, once)."""
    H = params["w1"].shape[0]
    f32, bf16 = jnp.float32, jnp.bfloat16

    def gates_T(w):  # (4H, H) -> 4 per-gate (H, H) blocks, transposed
        return [w[j * H:(j + 1) * H, :].T for j in range(4)]

    fg, bg = gates_T(params["wih_f"]), gates_T(params["wih_b"])
    fh, bh = gates_T(params["whh_f"]), gates_T(params["whh_b"])
    Z = jnp.zeros((H, H), f32)

    # interleaved per-gate layout: [i_f i_b | f_f f_b | g_f g_b | o_f o_b]
    w_in = jnp.concatenate(
        [jnp.concatenate([fg[j], bg[j]], axis=1) for j in range(4)], axis=1)      # (H, 8H)
    whh_top = jnp.concatenate(
        [jnp.concatenate([fh[j], Z], axis=1) for j in range(4)], axis=1)          # (H, 8H)
    whh_bot = jnp.concatenate(
        [jnp.concatenate([Z, bh[j]], axis=1) for j in range(4)], axis=1)          # (H, 8H)
    whh = jnp.concatenate([whh_top, whh_bot], axis=0)                             # (2H, 8H)

    bf, bb = params["bias_f"], params["bias_b"]
    bias = jnp.concatenate(
        [jnp.concatenate([bf[:, j * H:(j + 1) * H], bb[:, j * H:(j + 1) * H]], axis=1)
         for j in range(4)], axis=1)                                              # (1, 8H)

    w_diff = (params["w2"][1] - params["w2"][0]).reshape(1, H)
    b_diff = (params["b2"][:, 1] - params["b2"][:, 0]).reshape(1, 1)

    return {
        "embedding": params["embedding"].astype(f32),     # gathered rows cast to bf16 later
        # MXU operands in bf16 (f32 accumulation inside the kernel):
        "w_in": w_in.astype(bf16),
        "whh": whh.astype(bf16),
        "w1_t": params["w1"].T.astype(bf16),
        # post-matmul / elementwise terms stay f32:
        "bias": bias.astype(f32),
        "b1": params["b1"].astype(f32),
        "w_diff": w_diff.astype(f32),
        "b_diff": b_diff.astype(f32),
    }


@jax.jit
def sentence_match_forward(input_ids, packed):
    # TODO(synk): training branch (CrossEntropyLoss when target is given) not
    # implemented; this is the inference path (target=None).
    B, S = input_ids.shape
    H = packed["w1_t"].shape[1]

    # Embedding gather done by XLA (B*S rows ~ 2 KiB): cheaper than issuing
    # B*S tiny in-kernel row DMAs + semaphore waits. Cast to bf16 for the MXU.
    x = packed["embedding"][input_ids].astype(jnp.bfloat16)          # (B, S, H)

    # One batch tile at this toy size.  For larger B, shrink BT so the
    # "parallel" grid axis shards batch tiles across v7x's two TensorCores.
    BT = B
    grid = (B // BT,)

    def full(a):
        return pl.BlockSpec(a.shape, lambda i: (0,) * a.ndim)

    grid_spec = pltpu.PrefetchScalarGridSpec(
        num_scalar_prefetch=0,
        grid=grid,
        in_specs=[
            pl.BlockSpec((BT, S, H), lambda i: (i, 0, 0)),
            full(packed["w_in"]),
            full(packed["whh"]),
            full(packed["bias"]),
            full(packed["w1_t"]),
            full(packed["b1"]),
            full(packed["w_diff"]),
            full(packed["b_diff"]),
        ],
        out_specs=pl.BlockSpec((BT, 1), lambda i: (i, 0)),
    )

    probs1 = pl.pallas_call(
        smn_kernel,
        out_shape=jax.ShapeDtypeStruct((B, 1), jnp.float32),
        grid_spec=grid_spec,
        compiler_params=pltpu.CompilerParams(
            dimension_semantics=("parallel",)),
    )(x, packed["w_in"], packed["whh"], packed["bias"],
      packed["w1_t"], packed["b1"], packed["w_diff"], packed["b_diff"])

    # forward(..., target=None) returns softmax(x, -1)[:, 1]
    return probs1[:, 0]


def _reference_forward(input_ids, params):
    """Pure-JAX f32 reference mirroring the PyTorch forward, for a sanity check."""
    x = params["embedding"][input_ids]
    B, S, H = x.shape

    def run_dir(wih, whh, bias, reverse):
        h = jnp.zeros((B, H), jnp.float32)
        c = jnp.zeros((B, H), jnp.float32)
        hs = [None] * S
        ts = range(S - 1, -1, -1) if reverse else range(S)
        for t in ts:
            g = x[:, t, :] @ wih.T + h @ whh.T + bias[0]
            i_g = jax.nn.sigmoid(g[:, 0 * H:1 * H])
            f_g = jax.nn.sigmoid(g[:, 1 * H:2 * H])
            g_g = jnp.tanh(g[:, 2 * H:3 * H])
            o_g = jax.nn.sigmoid(g[:, 3 * H:4 * H])
            c = f_g * c + i_g * g_g
            h = o_g * jnp.tanh(c)
            hs[t] = h
        return jnp.stack(hs, axis=1)

    enc = jnp.concatenate(
        [run_dir(params["wih_f"], params["whh_f"], params["bias_f"], False),
         run_dir(params["wih_b"], params["whh_b"], params["bias_b"], True)],
        axis=-1)
    enc = jnp.maximum(enc, 0.0)
    lin = jnp.maximum(enc @ params["w1"].T + params["b1"][0], 0.0)
    pooled = jnp.max(lin, axis=1)
    logits = pooled @ params["w2"].T + params["b2"][0]
    return jax.nn.softmax(logits, axis=-1)[:, 1]


def init_params(key, vocab_size=20000, hidden_size=32):
    H = hidden_size
    keys = jax.random.split(key, 12)
    scale = 0.1
    return {
        "embedding": jax.random.normal(keys[0], (vocab_size, H), jnp.float32) * scale,
        # forward-direction LSTM (PyTorch gate order [i, f, g, o])
        "wih_f": jax.random.normal(keys[1], (4 * H, H), jnp.float32) * scale,
        "whh_f": jax.random.normal(keys[2], (4 * H, H), jnp.float32) * scale,
        "bias_f": jax.random.normal(keys[3], (1, 4 * H), jnp.float32) * scale,  # b_ih + b_hh
        # backward-direction LSTM
        "wih_b": jax.random.normal(keys[4], (4 * H, H), jnp.float32) * scale,
        "whh_b": jax.random.normal(keys[5], (4 * H, H), jnp.float32) * scale,
        "bias_b": jax.random.normal(keys[6], (1, 4 * H), jnp.float32) * scale,
        # encoder Linear(2H -> H)
        "w1": jax.random.normal(keys[7], (H, 2 * H), jnp.float32) * scale,
        "b1": jax.random.normal(keys[8], (1, H), jnp.float32) * scale,
        # classify_layer Linear(H -> 2)
        "w2": jax.random.normal(keys[9], (2, H), jnp.float32) * scale,
        "b2": jax.random.normal(keys[10], (1, 2), jnp.float32) * scale,
    }


if __name__ == "__main__":
    key = jax.random.PRNGKey(0)
    k_param, k_ids = jax.random.split(key)

    B, S, H = 2, 8, 32
    params = init_params(k_param, vocab_size=20000, hidden_size=H)
    input_ids = jax.random.randint(k_ids, (B, S), 0, 20000, dtype=jnp.int32)

    packed = pack_params(params)            # host-side weight packing, done once

    out = sentence_match_forward(input_ids, packed)
    out = jax.block_until_ready(out)

    ref = _reference_forward(input_ids, params)
    assert out.shape == (B,)
    assert bool(jnp.all(jnp.isfinite(out)))
    # bf16 MXU operands with f32 accumulation: small extra tolerance vs f32 reference.
    assert bool(jnp.allclose(out, ref, atol=3e-3, rtol=3e-3)), (out, ref)

    print("KERNEL_OK")
</pallas_src>

<mosaic_0001>
module attributes {stable_mosaic.version = 11 : i64} {
  func.func @smn_kernel(%arg0: i32, %arg1: memref<2x8x32xbf16, #tpu.memory_space<vmem>>, %arg2: memref<32x256xbf16, #tpu.memory_space<vmem>>, %arg3: memref<64x256xbf16, #tpu.memory_space<vmem>>, %arg4: memref<1x256xf32, #tpu.memory_space<vmem>>, %arg5: memref<64x32xbf16, #tpu.memory_space<vmem>>, %arg6: memref<1x32xf32, #tpu.memory_space<vmem>>, %arg7: memref<1x32xf32, #tpu.memory_space<vmem>>, %arg8: memref<1x1xf32, #tpu.memory_space<vmem>>, %arg9: memref<2x1xf32, #tpu.memory_space<vmem>>) attributes {dimension_semantics = [#tpu.dimension_semantics<parallel>], iteration_bounds = array<i64: 1>, scalar_prefetch = 0 : i64, scratch_operands = 0 : i64, tpu.core_type = #tpu.core_type<tc>, window_params = [{transform_indices = @transform_0, window_bounds = array<i64: 2, 8, 32>}, {pipeline_mode = #tpu.pipeline_mode<synchronous>, transform_indices = @transform_1, window_bounds = array<i64: 32, 256>}, {pipeline_mode = #tpu.pipeline_mode<synchronous>, transform_indices = @transform_2, window_bounds = array<i64: 64, 256>}, {pipeline_mode = #tpu.pipeline_mode<synchronous>, transform_indices = @transform_3, window_bounds = array<i64: 1, 256>}, {pipeline_mode = #tpu.pipeline_mode<synchronous>, transform_indices = @transform_4, window_bounds = array<i64: 64, 32>}, {pipeline_mode = #tpu.pipeline_mode<synchronous>, transform_indices = @transform_5, window_bounds = array<i64: 1, 32>}, {pipeline_mode = #tpu.pipeline_mode<synchronous>, transform_indices = @transform_6, window_bounds = array<i64: 1, 32>}, {pipeline_mode = #tpu.pipeline_mode<synchronous>, transform_indices = @transform_7, window_bounds = array<i64: 1, 1>}, {transform_indices = @transform_8, window_bounds = array<i64: 2, 1>}]} {
    %c0 = arith.constant 0 : index
    %c0_0 = arith.constant 0 : index
    %c0_1 = arith.constant 0 : index
    %0 = vector.load %arg1[%c0, %c0_0, %c0_1] : memref<2x8x32xbf16, #tpu.memory_space<vmem>>, vector<2x8x32xbf16>
    %1 = vector.shape_cast %0 : vector<2x8x32xbf16> to vector<16x32xbf16>
    %c0_2 = arith.constant 0 : index
    %c0_3 = arith.constant 0 : index
    %2 = vector.load %arg2[%c0_2, %c0_3] : memref<32x256xbf16, #tpu.memory_space<vmem>>, vector<32x256xbf16>
    %cst = arith.constant dense<0.000000e+00> : vector<16x256xf32>
    %3 = tpu.matmul %1, %2, %cst {dimension_numbers = #tpu.dot_dimension_numbers<[1], [0], [0], [1], [0, 0, 1, 1], [], []>} : vector<16x32xbf16>, vector<32x256xbf16>, vector<16x256xf32> -> vector<16x256xf32>
    %c0_4 = arith.constant 0 : index
    %c0_5 = arith.constant 0 : index
    %4 = vector.load %arg4[%c0_4, %c0_5] : memref<1x256xf32, #tpu.memory_space<vmem>>, vector<1x256xf32>
    %5 = vector.broadcast %4 : vector<1x256xf32> to vector<16x256xf32>
    %6 = arith.addf %3, %5 : vector<16x256xf32>
    %7 = vector.shape_cast %6 : vector<16x256xf32> to vector<2x8x256xf32>
    %c0_6 = arith.constant 0 : index
    %c0_7 = arith.constant 0 : index
    %8 = vector.load %arg3[%c0_6, %c0_7] : memref<64x256xbf16, #tpu.memory_space<vmem>>, vector<64x256xbf16>
    %9 = tpu.iota {dimensions = array<i32: 1>} : vector<1x256xi32>
    %c64_i32 = arith.constant 64 : i32
    %c0_i32 = arith.constant 0 : i32
    %10 = arith.cmpi eq, %c64_i32, %c0_i32 : i32
    %c1_i32 = arith.constant 1 : i32
    %11 = arith.select %10, %c1_i32, %c64_i32 : i32
    %12 = vector.broadcast %11 : i32 to vector<1x256xi32>
    %13 = arith.remsi %9, %12 : vector<1x256xi32>
    %c0_i32_8 = arith.constant 0 : i32
    %14 = vector.broadcast %c0_i32_8 : i32 to vector<1x256xi32>
    %15 = arith.cmpi ne, %13, %14 : vector<1x256xi32>
    %c0_i32_9 = arith.constant 0 : i32
    %16 = vector.broadcast %c0_i32_9 : i32 to vector<1x256xi32>
    %17 = arith.cmpi slt, %13, %16 : vector<1x256xi32>
    %c0_i32_10 = arith.constant 0 : i32
    %18 = arith.cmpi slt, %11, %c0_i32_10 : i32
    %19 = vector.broadcast %18 : i1 to vector<1x256xi1>
    %20 = vector.broadcast %19 : vector<1x256xi1> to vector<1x256xi1>
    %21 = arith.xori %17, %20 : vector<1x256xi1>
    %22 = arith.andi %21, %15 : vector<1x256xi1>
    %23 = vector.broadcast %11 : i32 to vector<1x256xi32>
    %24 = arith.addi %13, %23 : vector<1x256xi32>
    %25 = arith.select %22, %24, %13 : vector<1x256xi1>, vector<1x256xi32>
    %c32_i32 = arith.constant 32 : i32
    %26 = vector.broadcast %c32_i32 : i32 to vector<1x256xi32>
    %27 = arith.cmpi slt, %25, %26 : vector<1x256xi32>
    %28 = vector.extract_strided_slice %7 {offsets = [0, 0, 0], sizes = [2, 1, 256], strides = [1, 1, 1]} : vector<2x8x256xf32> to vector<2x1x256xf32>
    %29 = vector.shape_cast %28 : vector<2x1x256xf32> to vector<2x256xf32>
    %30 = vector.extract_strided_slice %7 {offsets = [0, 7, 0], sizes = [2, 1, 256], strides = [1, 1, 1]} : vector<2x8x256xf32> to vector<2x1x256xf32>
    %31 = vector.shape_cast %30 : vector<2x1x256xf32> to vector<2x256xf32>
    %32 = vector.shape_cast %27 : vector<1x256xi1> to vector<1x256xi1>
    %33 = vector.broadcast %32 : vector<1x256xi1> to vector<2x256xi1>
    %34 = arith.select %33, %29, %31 : vector<2x256xi1>, vector<2x256xf32>
    %35 = vector.extract_strided_slice %7 {offsets = [0, 1, 0], sizes = [2, 1, 256], strides = [1, 1, 1]} : vector<2x8x256xf32> to vector<2x1x256xf32>
    %36 = vector.shape_cast %35 : vector<2x1x256xf32> to vector<2x256xf32>
    %37 = vector.extract_strided_slice %7 {offsets = [0, 6, 0], sizes = [2, 1, 256], strides = [1, 1, 1]} : vector<2x8x256xf32> to vector<2x1x256xf32>
    %38 = vector.shape_cast %37 : vector<2x1x256xf32> to vector<2x256xf32>
    %39 = vector.shape_cast %27 : vector<1x256xi1> to vector<1x256xi1>
    %40 = vector.broadcast %39 : vector<1x256xi1> to vector<2x256xi1>
    %41 = arith.select %40, %36, %38 : vector<2x256xi1>, vector<2x256xf32>
    %42 = vector.extract_strided_slice %7 {offsets = [0, 2, 0], sizes = [2, 1, 256], strides = [1, 1, 1]} : vector<2x8x256xf32> to vector<2x1x256xf32>
    %43 = vector.shape_cast %42 : vector<2x1x256xf32> to vector<2x256xf32>
    %44 = vector.extract_strided_slice %7 {offsets = [0, 5, 0], sizes = [2, 1, 256], strides = [1, 1, 1]} : vector<2x8x256xf32> to vector<2x1x256xf32>
    %45 = vector.shape_cast %44 : vector<2x1x256xf32> to vector<2x256xf32>
    %46 = vector.shape_cast %27 : vector<1x256xi1> to vector<1x256xi1>
    %47 = vector.broadcast %46 : vector<1x256xi1> to vector<2x256xi1>
    %48 = arith.select %47, %43, %45 : vector<2x256xi1>, vector<2x256xf32>
    %49 = vector.extract_strided_slice %7 {offsets = [0, 3, 0], sizes = [2, 1, 256], strides = [1, 1, 1]} : vector<2x8x256xf32> to vector<2x1x256xf32>
    %50 = vector.shape_cast %49 : vector<2x1x256xf32> to vector<2x256xf32>
    %51 = vector.extract_strided_slice %7 {offsets = [0, 4, 0], sizes = [2, 1, 256], strides = [1, 1, 1]} : vector<2x8x256xf32> to vector<2x1x256xf32>
    %52 = vector.shape_cast %51 : vector<2x1x256xf32> to vector<2x256xf32>
    %53 = vector.shape_cast %27 : vector<1x256xi1> to vector<1x256xi1>
    %54 = vector.broadcast %53 : vector<1x256xi1> to vector<2x256xi1>
    %55 = arith.select %54, %50, %52 : vector<2x256xi1>, vector<2x256xf32>
    %56 = vector.extract_strided_slice %7 {offsets = [0, 4, 0], sizes = [2, 1, 256], strides = [1, 1, 1]} : vector<2x8x256xf32> to vector<2x1x256xf32>
    %57 = vector.shape_cast %56 : vector<2x1x256xf32> to vector<2x256xf32>
    %58 = vector.extract_strided_slice %7 {offsets = [0, 3, 0], sizes = [2, 1, 256], strides = [1, 1, 1]} : vector<2x8x256xf32> to vector<2x1x256xf32>
    %59 = vector.shape_cast %58 : vector<2x1x256xf32> to vector<2x256xf32>
    %60 = vector.shape_cast %27 : vector<1x256xi1> to vector<1x256xi1>
    %61 = vector.broadcast %60 : vector<1x256xi1> to vector<2x256xi1>
    %62 = arith.select %61, %57, %59 : vector<2x256xi1>, vector<2x256xf32>
    %63 = vector.extract_strided_slice %7 {offsets = [0, 5, 0], sizes = [2, 1, 256], strides = [1, 1, 1]} : vector<2x8x256xf32> to vector<2x1x256xf32>
    %64 = vector.shape_cast %63 : vector<2x1x256xf32> to vector<2x256xf32>
    %65 = vector.extract_strided_slice %7 {offsets = [0, 2, 0], sizes = [2, 1, 256], strides = [1, 1, 1]} : vector<2x8x256xf32> to vector<2x1x256xf32>
    %66 = vector.shape_cast %65 : vector<2x1x256xf32> to vector<2x256xf32>
    %67 = vector.shape_cast %27 : vector<1x256xi1> to vector<1x256xi1>
    %68 = vector.broadcast %67 : vector<1x256xi1> to vector<2x256xi1>
    %69 = arith.select %68, %64, %66 : vector<2x256xi1>, vector<2x256xf32>
    %70 = vector.extract_strided_slice %7 {offsets = [0, 6, 0], sizes = [2, 1, 256], strides = [1, 1, 1]} : vector<2x8x256xf32> to vector<2x1x256xf32>
    %71 = vector.shape_cast %70 : vector<2x1x256xf32> to vector<2x256xf32>
    %72 = vector.extract_strided_slice %7 {offsets = [0, 1, 0], sizes = [2, 1, 256], strides = [1, 1, 1]} : vector<2x8x256xf32> to vector<2x1x256xf32>
    %73 = vector.shape_cast %72 : vector<2x1x256xf32> to vector<2x256xf32>
    %74 = vector.shape_cast %27 : vector<1x256xi1> to vector<1x256xi1>
    %75 = vector.broadcast %74 : vector<1x256xi1> to vector<2x256xi1>
    %76 = arith.select %75, %71, %73 : vector<2x256xi1>, vector<2x256xf32>
    %77 = vector.extract_strided_slice %7 {offsets = [0, 7, 0], sizes = [2, 1, 256], strides = [1, 1, 1]} : vector<2x8x256xf32> to vector<2x1x256xf32>
    %78 = vector.shape_cast %77 : vector<2x1x256xf32> to vector<2x256xf32>
    %79 = vector.extract_strided_slice %7 {offsets = [0, 0, 0], sizes = [2, 1, 256], strides = [1, 1, 1]} : vector<2x8x256xf32> to vector<2x1x256xf32>
    %80 = vector.shape_cast %79 : vector<2x1x256xf32> to vector<2x256xf32>
    %81 = vector.shape_cast %27 : vector<1x256xi1> to vector<1x256xi1>
    %82 = vector.broadcast %81 : vector<1x256xi1> to vector<2x256xi1>
    %83 = arith.select %82, %78, %80 : vector<2x256xi1>, vector<2x256xf32>
    %cst_11 = arith.constant 0.000000e+00 : f32
    %84 = vector.broadcast %cst_11 : f32 to vector<2x64xf32>
    %cst_12 = arith.constant 0.000000e+00 : f32
    %85 = vector.broadcast %cst_12 : f32 to vector<2x64xf32>
    %86 = arith.truncf %84 : vector<2x64xf32> to vector<2x64xbf16>
    %cst_13 = arith.constant dense<0.000000e+00> : vector<2x256xf32>
    %87 = tpu.matmul %86, %8, %cst_13 {dimension_numbers = #tpu.dot_dimension_numbers<[1], [0], [0], [1], [0, 0, 1, 1], [], []>} : vector<2x64xbf16>, vector<64x256xbf16>, vector<2x256xf32> -> vector<2x256xf32>
    %88 = arith.addf %34, %87 : vector<2x256xf32>
    %89 = arith.negf %88 : vector<2x256xf32>
    %90 = math.exp %89 : vector<2x256xf32>
    %cst_14 = arith.constant 1.000000e+00 : f32
    %91 = vector.broadcast %cst_14 : f32 to vector<2x256xf32>
    %92 = arith.addf %91, %90 : vector<2x256xf32>
    %93 = arith.divf %91, %92 : vector<2x256xf32>
    %94 = vector.extract_strided_slice %93 {offsets = [0, 0], sizes = [2, 64], strides = [1, 1]} : vector<2x256xf32> to vector<2x64xf32>
    %95 = vector.extract_strided_slice %93 {offsets = [0, 64], sizes = [2, 64], strides = [1, 1]} : vector<2x256xf32> to vector<2x64xf32>
    %96 = vector.extract_strided_slice %93 {offsets = [0, 192], sizes = [2, 64], strides = [1, 1]} : vector<2x256xf32> to vector<2x64xf32>
    %97 = vector.extract_strided_slice %88 {offsets = [0, 128], sizes = [2, 64], strides = [1, 1]} : vector<2x256xf32> to vector<2x64xf32>
    %98 = math.tanh %97 : vector<2x64xf32>
    %99 = arith.mulf %95, %85 : vector<2x64xf32>
    %100 = arith.mulf %94, %98 : vector<2x64xf32>
    %101 = arith.addf %99, %100 : vector<2x64xf32>
    %102 = math.tanh %101 : vector<2x64xf32>
    %103 = arith.mulf %96, %102 : vector<2x64xf32>
    %104 = vector.extract_strided_slice %103 {offsets = [0, 0], sizes = [2, 32], strides = [1, 1]} : vector<2x64xf32> to vector<2x32xf32>
    %105 = vector.extract_strided_slice %103 {offsets = [0, 32], sizes = [2, 32], strides = [1, 1]} : vector<2x64xf32> to vector<2x32xf32>
    %106 = arith.truncf %103 : vector<2x64xf32> to vector<2x64xbf16>
    %cst_15 = arith.constant dense<0.000000e+00> : vector<2x256xf32>
    %107 = tpu.matmul %106, %8, %cst_15 {dimension_numbers = #tpu.dot_dimension_numbers<[1], [0], [0], [1], [0, 0, 1, 1], [], []>} : vector<2x64xbf16>, vector<64x256xbf16>, vector<2x256xf32> -> vector<2x256xf32>
    %108 = arith.addf %41, %107 : vector<2x256xf32>
    %109 = arith.negf %108 : vector<2x256xf32>
    %110 = math.exp %109 : vector<2x256xf32>
    %cst_16 = arith.constant 1.000000e+00 : f32
    %111 = vector.broadcast %cst_16 : f32 to vector<2x256xf32>
    %112 = arith.addf %111, %110 : vector<2x256xf32>
    %113 = arith.divf %111, %112 : vector<2x256xf32>
    %114 = vector.extract_strided_slice %113 {offsets = [0, 0], sizes = [2, 64], strides = [1, 1]} : vector<2x256xf32> to vector<2x64xf32>
    %115 = vector.extract_strided_slice %113 {offsets = [0, 64], sizes = [2, 64], strides = [1, 1]} : vector<2x256xf32> to vector<2x64xf32>
    %116 = vector.extract_strided_slice %113 {offsets = [0, 192], sizes = [2, 64], strides = [1, 1]} : vector<2x256xf32> to vector<2x64xf32>
    %117 = vector.extract_strided_slice %108 {offsets = [0, 128], sizes = [2, 64], strides = [1, 1]} : vector<2x256xf32> to vector<2x64xf32>
    %118 = math.tanh %117 : vector<2x64xf32>
    %119 = arith.mulf %115, %101 : vector<2x64xf32>
    %120 = arith.mulf %114, %118 : vector<2x64xf32>
    %121 = arith.addf %119, %120 : vector<2x64xf32>
    %122 = math.tanh %121 : vector<2x64xf32>
    %123 = arith.mulf %116, %122 : vector<2x64xf32>
    %124 = vector.extract_strided_slice %123 {offsets = [0, 0], sizes = [2, 32], strides = [1, 1]} : vector<2x64xf32> to vector<2x32xf32>
    %125 = vector.extract_strided_slice %123 {offsets = [0, 32], sizes = [2, 32], strides = [1, 1]} : vector<2x64xf32> to vector<2x32xf32>
    %126 = arith.truncf %123 : vector<2x64xf32> to vector<2x64xbf16>
    %cst_17 = arith.constant dense<0.000000e+00> : vector<2x256xf32>
    %127 = tpu.matmul %126, %8, %cst_17 {dimension_numbers = #tpu.dot_dimension_numbers<[1], [0], [0], [1], [0, 0, 1, 1], [], []>} : vector<2x64xbf16>, vector<64x256xbf16>, vector<2x256xf32> -> vector<2x256xf32>
    %128 = arith.addf %48, %127 : vector<2x256xf32>
    %129 = arith.negf %128 : vector<2x256xf32>
    %130 = math.exp %129 : vector<2x256xf32>
    %cst_18 = arith.constant 1.000000e+00 : f32
    %131 = vector.broadcast %cst_18 : f32 to vector<2x256xf32>
    %132 = arith.addf %131, %130 : vector<2x256xf32>
    %133 = arith.divf %131, %132 : vector<2x256xf32>
    %134 = vector.extract_strided_slice %133 {offsets = [0, 0], sizes = [2, 64], strides = [1, 1]} : vector<2x256xf32> to vector<2x64xf32>
    %135 = vector.extract_strided_slice %133 {offsets = [0, 64], sizes = [2, 64], strides = [1, 1]} : vector<2x256xf32> to vector<2x64xf32>
    %136 = vector.extract_strided_slice %133 {offsets = [0, 192], sizes = [2, 64], strides = [1, 1]} : vector<2x256xf32> to vector<2x64xf32>
    %137 = vector.extract_strided_slice %128 {offsets = [0, 128], sizes = [2, 64], strides = [1, 1]} : vector<2x256xf32> to vector<2x64xf32>
    %138 = math.tanh %137 : vector<2x64xf32>
    %139 = arith.mulf %135, %121 : vector<2x64xf32>
    %140 = arith.mulf %134, %138 : vector<2x64xf32>
    %141 = arith.addf %139, %140 : vector<2x64xf32>
    %142 = math.tanh %141 : vector<2x64xf32>
    %143 = arith.mulf %136, %142 : vector<2x64xf32>
    %144 = vector.extract_strided_slice %143 {offsets = [0, 0], sizes = [2, 32], strides = [1, 1]} : vector<2x64xf32> to vector<2x32xf32>
    %145 = vector.extract_strided_slice %143 {offsets = [0, 32], sizes = [2, 32], strides = [1, 1]} : vector<2x64xf32> to vector<2x32xf32>
    %146 = arith.truncf %143 : vector<2x64xf32> to vector<2x64xbf16>
    %cst_19 = arith.constant dense<0.000000e+00> : vector<2x256xf32>
    %147 = tpu.matmul %146, %8, %cst_19 {dimension_numbers = #tpu.dot_dimension_numbers<[1], [0], [0], [1], [0, 0, 1, 1], [], []>} : vector<2x64xbf16>, vector<64x256xbf16>, vector<2x256xf32> -> vector<2x256xf32>
    %148 = arith.addf %55, %147 : vector<2x256xf32>
    %149 = arith.negf %148 : vector<2x256xf32>
    %150 = math.exp %149 : vector<2x256xf32>
    %cst_20 = arith.constant 1.000000e+00 : f32
    %151 = vector.broadcast %cst_20 : f32 to vector<2x256xf32>
    %152 = arith.addf %151, %150 : vector<2x256xf32>
    %153 = arith.divf %151, %152 : vector<2x256xf32>
    %154 = vector.extract_strided_slice %153 {offsets = [0, 0], sizes = [2, 64], strides = [1, 1]} : vector<2x256xf32> to vector<2x64xf32>
    %155 = vector.extract_strided_slice %153 {offsets = [0, 64], sizes = [2, 64], strides = [1, 1]} : vector<2x256xf32> to vector<2x64xf32>
    %156 = vector.extract_strided_slice %153 {offsets = [0, 192], sizes = [2, 64], strides = [1, 1]} : vector<2x256xf32> to vector<2x64xf32>
    %157 = vector.extract_strided_slice %148 {offsets = [0, 128], sizes = [2, 64], strides = [1, 1]} : vector<2x256xf32> to vector<2x64xf32>
    %158 = math.tanh %157 : vector<2x64xf32>
    %159 = arith.mulf %155, %141 : vector<2x64xf32>
    %160 = arith.mulf %154, %158 : vector<2x64xf32>
    %161 = arith.addf %159, %160 : vector<2x64xf32>
    %162 = math.tanh %161 : vector<2x64xf32>
    %163 = arith.mulf %156, %162 : vector<2x64xf32>
    %164 = vector.extract_strided_slice %163 {offsets = [0, 0], sizes = [2, 32], strides = [1, 1]} : vector<2x64xf32> to vector<2x32xf32>
    %165 = vector.extract_strided_slice %163 {offsets = [0, 32], sizes = [2, 32], strides = [1, 1]} : vector<2x64xf32> to vector<2x32xf32>
    %166 = arith.truncf %163 : vector<2x64xf32> to vector<2x64xbf16>
    %cst_21 = arith.constant dense<0.000000e+00> : vector<2x256xf32>
    %167 = tpu.matmul %166, %8, %cst_21 {dimension_numbers = #tpu.dot_dimension_numbers<[1], [0], [0], [1], [0, 0, 1, 1], [], []>} : vector<2x64xbf16>, vector<64x256xbf16>, vector<2x256xf32> -> vector<2x256xf32>
    %168 = arith.addf %62, %167 : vector<2x256xf32>
    %169 = arith.negf %168 : vector<2x256xf32>
    %170 = math.exp %169 : vector<2x256xf32>
    %cst_22 = arith.constant 1.000000e+00 : f32
    %171 = vector.broadcast %cst_22 : f32 to vector<2x256xf32>
    %172 = arith.addf %171, %170 : vector<2x256xf32>
    %173 = arith.divf %171, %172 : vector<2x256xf32>
    %174 = vector.extract_strided_slice %173 {offsets = [0, 0], sizes = [2, 64], strides = [1, 1]} : vector<2x256xf32> to vector<2x64xf32>
    %175 = vector.extract_strided_slice %173 {offsets = [0, 64], sizes = [2, 64], strides = [1, 1]} : vector<2x256xf32> to vector<2x64xf32>
    %176 = vector.extract_strided_slice %173 {offsets = [0, 192], sizes = [2, 64], strides = [1, 1]} : vector<2x256xf32> to vector<2x64xf32>
    %177 = vector.extract_strided_slice %168 {offsets = [0, 128], sizes = [2, 64], strides = [1, 1]} : vector<2x256xf32> to vector<2x64xf32>
    %178 = math.tanh %177 : vector<2x64xf32>
    %179 = arith.mulf %175, %161 : vector<2x64xf32>
    %180 = arith.mulf %174, %178 : vector<2x64xf32>
    %181 = arith.addf %179, %180 : vector<2x64xf32>
    %182 = math.tanh %181 : vector<2x64xf32>
    %183 = arith.mulf %176, %182 : vector<2x64xf32>
    %184 = vector.extract_strided_slice %183 {offsets = [0, 0], sizes = [2, 32], strides = [1, 1]} : vector<2x64xf32> to vector<2x32xf32>
    %185 = vector.extract_strided_slice %183 {offsets = [0, 32], sizes = [2, 32], strides = [1, 1]} : vector<2x64xf32> to vector<2x32xf32>
    %186 = arith.truncf %183 : vector<2x64xf32> to vector<2x64xbf16>
    %cst_23 = arith.constant dense<0.000000e+00> : vector<2x256xf32>
    %187 = tpu.matmul %186, %8, %cst_23 {dimension_numbers = #tpu.dot_dimension_numbers<[1], [0], [0], [1], [0, 0, 1, 1], [], []>} : vector<2x64xbf16>, vector<64x256xbf16>, vector<2x256xf32> -> vector<2x256xf32>
    %188 = arith.addf %69, %187 : vector<2x256xf32>
    %189 = arith.negf %188 : vector<2x256xf32>
    %190 = math.exp %189 : vector<2x256xf32>
    %cst_24 = arith.constant 1.000000e+00 : f32
    %191 = vector.broadcast %cst_24 : f32 to vector<2x256xf32>
    %192 = arith.addf %191, %190 : vector<2x256xf32>
    %193 = arith.divf %191, %192 : vector<2x256xf32>
    %194 = vector.extract_strided_slice %193 {offsets = [0, 0], sizes = [2, 64], strides = [1, 1]} : vector<2x256xf32> to vector<2x64xf32>
    %195 = vector.extract_strided_slice %193 {offsets = [0, 64], sizes = [2, 64], strides = [1, 1]} : vector<2x256xf32> to vector<2x64xf32>
    %196 = vector.extract_strided_slice %193 {offsets = [0, 192], sizes = [2, 64], strides = [1, 1]} : vector<2x256xf32> to vector<2x64xf32>
    %197 = vector.extract_strided_slice %188 {offsets = [0, 128], sizes = [2, 64], strides = [1, 1]} : vector<2x256xf32> to vector<2x64xf32>
    %198 = math.tanh %197 : vector<2x64xf32>
    %199 = arith.mulf %195, %181 : vector<2x64xf32>
    %200 = arith.mulf %194, %198 : vector<2x64xf32>
    %201 = arith.addf %199, %200 : vector<2x64xf32>
    %202 = math.tanh %201 : vector<2x64xf32>
    %203 = arith.mulf %196, %202 : vector<2x64xf32>
    %204 = vector.extract_strided_slice %203 {offsets = [0, 0], sizes = [2, 32], strides = [1, 1]} : vector<2x64xf32> to vector<2x32xf32>
    %205 = vector.extract_strided_slice %203 {offsets = [0, 32], sizes = [2, 32], strides = [1, 1]} : vector<2x64xf32> to vector<2x32xf32>
    %206 = arith.truncf %203 : vector<2x64xf32> to vector<2x64xbf16>
    %cst_25 = arith.constant dense<0.000000e+00> : vector<2x256xf32>
    %207 = tpu.matmul %206, %8, %cst_25 {dimension_numbers = #tpu.dot_dimension_numbers<[1], [0], [0], [1], [0, 0, 1, 1], [], []>} : vector<2x64xbf16>, vector<64x256xbf16>, vector<2x256xf32> -> vector<2x256xf32>
    %208 = arith.addf %76, %207 : vector<2x256xf32>
    %209 = arith.negf %208 : vector<2x256xf32>
    %210 = math.exp %209 : vector<2x256xf32>
    %cst_26 = arith.constant 1.000000e+00 : f32
    %211 = vector.broadcast %cst_26 : f32 to vector<2x256xf32>
    %212 = arith.addf %211, %210 : vector<2x256xf32>
    %213 = arith.divf %211, %212 : vector<2x256xf32>
    %214 = vector.extract_strided_slice %213 {offsets = [0, 0], sizes = [2, 64], strides = [1, 1]} : vector<2x256xf32> to vector<2x64xf32>
    %215 = vector.extract_strided_slice %213 {offsets = [0, 64], sizes = [2, 64], strides = [1, 1]} : vector<2x256xf32> to vector<2x64xf32>
    %216 = vector.extract_strided_slice %213 {offsets = [0, 192], sizes = [2, 64], strides = [1, 1]} : vector<2x256xf32> to vector<2x64xf32>
    %217 = vector.extract_strided_slice %208 {offsets = [0, 128], sizes = [2, 64], strides = [1, 1]} : vector<2x256xf32> to vector<2x64xf32>
    %218 = math.tanh %217 : vector<2x64xf32>
    %219 = arith.mulf %215, %201 : vector<2x64xf32>
    %220 = arith.mulf %214, %218 : vector<2x64xf32>
    %221 = arith.addf %219, %220 : vector<2x64xf32>
    %222 = math.tanh %221 : vector<2x64xf32>
    %223 = arith.mulf %216, %222 : vector<2x64xf32>
    %224 = vector.extract_strided_slice %223 {offsets = [0, 0], sizes = [2, 32], strides = [1, 1]} : vector<2x64xf32> to vector<2x32xf32>
    %225 = vector.extract_strided_slice %223 {offsets = [0, 32], sizes = [2, 32], strides = [1, 1]} : vector<2x64xf32> to vector<2x32xf32>
    %226 = arith.truncf %223 : vector<2x64xf32> to vector<2x64xbf16>
    %cst_27 = arith.constant dense<0.000000e+00> : vector<2x256xf32>
    %227 = tpu.matmul %226, %8, %cst_27 {dimension_numbers = #tpu.dot_dimension_numbers<[1], [0], [0], [1], [0, 0, 1, 1], [], []>} : vector<2x64xbf16>, vector<64x256xbf16>, vector<2x256xf32> -> vector<2x256xf32>
    %228 = arith.addf %83, %227 : vector<2x256xf32>
    %229 = arith.negf %228 : vector<2x256xf32>
    %230 = math.exp %229 : vector<2x256xf32>
    %cst_28 = arith.constant 1.000000e+00 : f32
    %231 = vector.broadcast %cst_28 : f32 to vector<2x256xf32>
    %232 = arith.addf %231, %230 : vector<2x256xf32>
    %233 = arith.divf %231, %232 : vector<2x256xf32>
    %234 = vector.extract_strided_slice %233 {offsets = [0, 0], sizes = [2, 64], strides = [1, 1]} : vector<2x256xf32> to vector<2x64xf32>
    %235 = vector.extract_strided_slice %233 {offsets = [0, 64], sizes = [2, 64], strides = [1, 1]} : vector<2x256xf32> to vector<2x64xf32>
    %236 = vector.extract_strided_slice %233 {offsets = [0, 192], sizes = [2, 64], strides = [1, 1]} : vector<2x256xf32> to vector<2x64xf32>
    %237 = vector.extract_strided_slice %228 {offsets = [0, 128], sizes = [2, 64], strides = [1, 1]} : vector<2x256xf32> to vector<2x64xf32>
    %238 = math.tanh %237 : vector<2x64xf32>
    %239 = arith.mulf %235, %221 : vector<2x64xf32>
    %240 = arith.mulf %234, %238 : vector<2x64xf32>
    %241 = arith.addf %239, %240 : vector<2x64xf32>
    %242 = math.tanh %241 : vector<2x64xf32>
    %243 = arith.mulf %236, %242 : vector<2x64xf32>
    %244 = vector.extract_strided_slice %243 {offsets = [0, 0], sizes = [2, 32], strides = [1, 1]} : vector<2x64xf32> to vector<2x32xf32>
    %245 = vector.extract_strided_slice %243 {offsets = [0, 32], sizes = [2, 32], strides = [1, 1]} : vector<2x64xf32> to vector<2x32xf32>
    %246 = tpu.concatenate %104, %124, %144, %164, %184, %204, %224, %244 in 0 : vector<2x32xf32>, vector<2x32xf32>, vector<2x32xf32>, vector<2x32xf32>, vector<2x32xf32>, vector<2x32xf32>, vector<2x32xf32>, vector<2x32xf32> -> vector<16x32xf32>
    %247 = tpu.concatenate %245, %225, %205, %185, %165, %145, %125, %105 in 0 : vector<2x32xf32>, vector<2x32xf32>, vector<2x32xf32>, vector<2x32xf32>, vector<2x32xf32>, vector<2x32xf32>, vector<2x32xf32>, vector<2x32xf32> -> vector<16x32xf32>
    %248 = tpu.concatenate %246, %247 in 1 : vector<16x32xf32>, vector<16x32xf32> -> vector<16x64xf32>
    %cst_29 = arith.constant 0.000000e+00 : f32
    %249 = vector.broadcast %cst_29 : f32 to vector<16x64xf32>
    %250 = arith.maximumf %248, %249 : vector<16x64xf32>
    %251 = arith.truncf %250 : vector<16x64xf32> to vector<16x64xbf16>
    %c0_30 = arith.constant 0 : index
    %c0_31 = arith.constant 0 : index
    %252 = vector.load %arg5[%c0_30, %c0_31] : memref<64x32xbf16, #tpu.memory_space<vmem>>, vector<64x32xbf16>
    %cst_32 = arith.constant dense<0.000000e+00> : vector<16x32xf32>
    %253 = tpu.matmul %251, %252, %cst_32 {dimension_numbers = #tpu.dot_dimension_numbers<[1], [0], [0], [1], [0, 0, 1, 1], [], []>} : vector<16x64xbf16>, vector<64x32xbf16>, vector<16x32xf32> -> vector<16x32xf32>
    %c0_33 = arith.constant 0 : index
    %c0_34 = arith.constant 0 : index
    %254 = vector.load %arg6[%c0_33, %c0_34] : memref<1x32xf32, #tpu.memory_space<vmem>>, vector<1x32xf32>
    %255 = vector.broadcast %254 : vector<1x32xf32> to vector<16x32xf32>
    %256 = arith.addf %253, %255 : vector<16x32xf32>
    %cst_35 = arith.constant 0.000000e+00 : f32
    %257 = vector.broadcast %cst_35 : f32 to vector<16x32xf32>
    %258 = arith.maximumf %256, %257 : vector<16x32xf32>
    %259 = vector.shape_cast %258 : vector<16x32xf32> to vector<8x2x32xf32>
    %cst_36 = arith.constant dense<0xFF800000> : vector<2x32xf32>
    %260 = vector.multi_reduction <maximumf>, %259, %cst_36 [0] : vector<8x2x32xf32> to vector<2x32xf32>
    %c0_37 = arith.constant 0 : index
    %c0_38 = arith.constant 0 : index
    %261 = vector.load %arg7[%c0_37, %c0_38] : memref<1x32xf32, #tpu.memory_space<vmem>>, vector<1x32xf32>
    %262 = vector.broadcast %261 : vector<1x32xf32> to vector<2x32xf32>
    %263 = arith.mulf %260, %262 : vector<2x32xf32>
    %cst_39 = arith.constant dense<0.000000e+00> : vector<2xf32>
    %264 = vector.multi_reduction <add>, %263, %cst_39 [1] : vector<2x32xf32> to vector<2xf32>
    %265 = vector.shape_cast %264 : vector<2xf32> to vector<2x1xf32>
    %c0_40 = arith.constant 0 : index
    %c0_41 = arith.constant 0 : index
    %266 = vector.load %arg8[%c0_40, %c0_41] : memref<1x1xf32, #tpu.memory_space<vmem>>, vector<1x1xf32>
    %267 = vector.broadcast %266 : vector<1x1xf32> to vector<2x1xf32>
    %268 = arith.addf %265, %267 : vector<2x1xf32>
    %269 = arith.negf %268 : vector<2x1xf32>
    %270 = math.exp %269 : vector<2x1xf32>
    %cst_42 = arith.constant 1.000000e+00 : f32
    %271 = vector.broadcast %cst_42 : f32 to vector<2x1xf32>
    %272 = arith.addf %271, %270 : vector<2x1xf32>
    %273 = arith.divf %271, %272 : vector<2x1xf32>
    %c0_43 = arith.constant 0 : index
    %c0_44 = arith.constant 0 : index
    %274 = vector.load %arg9[%c0_43, %c0_44] : memref<2x1xf32, #tpu.memory_space<vmem>>, vector<2x1xf32>
    tpu.vector_store %arg9[%c0_43, %c0_44], %273 {strides = array<i32>} : memref<2x1xf32, #tpu.memory_space<vmem>>, vector<2x1xf32>,
    return
  }
  func.func @transform_0(%arg0: i32) -> (i32, i32, i32) {
    %c0_i32 = arith.constant 0 : i32
    %c0_i32_0 = arith.constant 0 : i32
    %c0_i32_1 = arith.constant 0 : i32
    return %arg0, %c0_i32, %c0_i32_0 : i32, i32, i32
  }
  func.func @transform_1(%arg0: i32) -> (i32, i32) {
    %c0_i32 = arith.constant 0 : i32
    %c0_i32_0 = arith.constant 0 : i32
    %c0_i32_1 = arith.constant 0 : i32
    return %c0_i32, %c0_i32_0 : i32, i32
  }
  func.func @transform_2(%arg0: i32) -> (i32, i32) {
    %c0_i32 = arith.constant 0 : i32
    %c0_i32_0 = arith.constant 0 : i32
    %c0_i32_1 = arith.constant 0 : i32
    return %c0_i32, %c0_i32_0 : i32, i32
  }
  func.func @transform_3(%arg0: i32) -> (i32, i32) {
    %c0_i32 = arith.constant 0 : i32
    %c0_i32_0 = arith.constant 0 : i32
    %c0_i32_1 = arith.constant 0 : i32
    return %c0_i32, %c0_i32_0 : i32, i32
  }
  func.func @transform_4(%arg0: i32) -> (i32, i32) {
    %c0_i32 = arith.constant 0 : i32
    %c0_i32_0 = arith.constant 0 : i32
    %c0_i32_1 = arith.constant 0 : i32
    return %c0_i32, %c0_i32_0 : i32, i32
  }
  func.func @transform_5(%arg0: i32) -> (i32, i32) {
    %c0_i32 = arith.constant 0 : i32
    %c0_i32_0 = arith.constant 0 : i32
    %c0_i32_1 = arith.constant 0 : i32
    return %c0_i32, %c0_i32_0 : i32, i32
  }
  func.func @transform_6(%arg0: i32) -> (i32, i32) {
    %c0_i32 = arith.constant 0 : i32
    %c0_i32_0 = arith.constant 0 : i32
    %c0_i32_1 = arith.constant 0 : i32
    return %c0_i32, %c0_i32_0 : i32, i32
  }
  func.func @transform_7(%arg0: i32) -> (i32, i32) {
    %c0_i32 = arith.constant 0 : i32
    %c0_i32_0 = arith.constant 0 : i32
    %c0_i32_1 = arith.constant 0 : i32
    return %c0_i32, %c0_i32_0 : i32, i32
  }
  func.func @transform_8(%arg0: i32) -> (i32, i32) {
    %c0_i32 = arith.constant 0 : i32
    %c0_i32_0 = arith.constant 0 : i32
    return %arg0, %c0_i32 : i32, i32
  }
}

</mosaic_0001>

<llo_original>
// kernel: sentence_match_forward.1
$region0: #{sentence_match_forward.1}
  #allocation0 [shape = 'u32[]', space=smem, size = 0x4, offset = 0x4, fixed_abs, tag = 'smem constant byte address 0x4 - core index']
  #allocation1 [shape = 'u32[72,128]{1,0:T(1,128)}', space=vmem, size = 0x9000, scoped, tag = 'internal scratch']
  #allocation2 [shape = 'f32[1,1]{1,0:T(1,128)S(1)}', space=vmem, size = 0x200, scoped, tag = 'scoped memory for sentence_match_forward.1']
  %s0 = inlined_call_operand.vmem [shape: bf16[2,8,32], index: 0, kind: input, shape index: {}]
  %s1 = inlined_call_operand.vmem [shape: bf16[32,256], index: 1, kind: input, shape index: {}]
  %s2 = inlined_call_operand.vmem [shape: bf16[64,256], index: 2, kind: input, shape index: {}]
  %s3 = inlined_call_operand.vmem [shape: f32[1,256], index: 3, kind: input, shape index: {}]
  %s4 = inlined_call_operand.vmem [shape: bf16[64,32], index: 4, kind: input, shape index: {}]
  %s5 = inlined_call_operand.vmem [shape: f32[1,32], index: 5, kind: input, shape index: {}]
  %s6 = inlined_call_operand.vmem [shape: f32[1,32], index: 6, kind: input, shape index: {}]
  %s7 = inlined_call_operand.<no memory space> [shape: f32[1,1], index: 7, kind: input, shape index: {}]
  %s8 = inlined_call_operand.vmem [shape: f32[2,1], index: 8, kind: output, shape index: {}]
  %s9 = sld [smem:[#allocation0]]
  $region42: #{sentence_match_forward.1} parent=0
    _
  %s11 = ssub.s32 1, %s9
  %s12 = scalar_select 0, %s11, %s9
  %v13 = vstv %s7
  %14 = vst [vmem:[#allocation2] sm:$0x1] %v13
  // Predicated region
  $region2: #{sentence_match_forward.1} parent=0 // pred_check
    _
  $region3: #{sentence_match_forward.1} parent=0 // pred_check_branch
    %16 = sbr.rel (0) target = $region5
  $region4: #{sentence_match_forward.1} parent=0 // pred_region
    _
  $region5: #{sentence_match_forward.1} parent=0 // pred_fallthru
    _
  // Predicated region
  $region6: #{sentence_match_forward.1} parent=0 // pred_check
    _
  $region7: #{sentence_match_forward.1} parent=0 // pred_check_branch
    %18 = sbr.rel (0) target = $region9
  $region8: #{sentence_match_forward.1} parent=0 // pred_region
    _
  $region9: #{sentence_match_forward.1} parent=0 // pred_fallthru
    _
  // Predicated region
  $region10: #{sentence_match_forward.1} parent=0 // pred_check
    _
  $region11: #{sentence_match_forward.1} parent=0 // pred_check_branch
    %20 = sbr.rel (0) target = $region13
  $region12: #{sentence_match_forward.1} parent=0 // pred_region
    _
  $region13: #{sentence_match_forward.1} parent=0 // pred_fallthru
    _
  // Predicated region
  $region14: #{sentence_match_forward.1} parent=0 // pred_check
    _
  $region15: #{sentence_match_forward.1} parent=0 // pred_check_branch
    %22 = sbr.rel (0) target = $region17
  $region16: #{sentence_match_forward.1} parent=0 // pred_region
    _
  $region17: #{sentence_match_forward.1} parent=0 // pred_fallthru
    _
  // Predicated region
  $region18: #{sentence_match_forward.1} parent=0 // pred_check
    _
  $region19: #{sentence_match_forward.1} parent=0 // pred_check_branch
    %24 = sbr.rel (0) target = $region21
  $region20: #{sentence_match_forward.1} parent=0 // pred_region
    _
  $region21: #{sentence_match_forward.1} parent=0 // pred_fallthru
    _
  // Predicated region
  $region22: #{sentence_match_forward.1} parent=0 // pred_check
    _
  $region23: #{sentence_match_forward.1} parent=0 // pred_check_branch
    %26 = sbr.rel (0) target = $region25
  $region24: #{sentence_match_forward.1} parent=0 // pred_region
    _
  $region25: #{sentence_match_forward.1} parent=0 // pred_fallthru
    _
  // Predicated region
  $region26: #{sentence_match_forward.1} parent=0 // pred_check
    _
  $region27: #{sentence_match_forward.1} parent=0 // pred_check_branch
    %28 = sbr.rel (0) target = $region29
  $region28: #{sentence_match_forward.1} parent=0 // pred_region
    _
  $region29: #{sentence_match_forward.1} parent=0 // pred_fallthru
    _
  // Predicated region
  $region30: #{sentence_match_forward.1} parent=0 // pred_check
    _
  $region31: #{sentence_match_forward.1} parent=0 // pred_check_branch
    %30 = sbr.rel (0) target = $region33
  $region32: #{sentence_match_forward.1} parent=0 // pred_region
    _
  $region33: #{sentence_match_forward.1} parent=0 // pred_fallthru
    _
  %v32 = vld [vmem:[%s0] sm:$0xf]
  %v33 = vld [vmem:[%s0 + $0x4] sm:$0xf]
  %v34 = vld [vmem:[%s1] sm:$0xff]
  %v35 = vld [vmem:[%s1 + $0x8] sm:$0xff]
  %v36 = vld [vmem:[%s1 + $0x10] sm:$0xff]
  %v37 = vld [vmem:[%s1 + $0x18] sm:$0xff]
  %v38 = vld [vmem:[%s3] sm:$0x3]
  %v40 = vperm.slane %v38, 0
  %v41 = vperm.slane %v38, 1
  %v46 = vunpack.c.l.b16 %v32
  %v47 = vunpack.c.l.b16 %v33
  %v48 = vpack.c.b16 %v47, %v46
  %v53 = vunpack.c.l.b16 %v34
  %v54 = vunpack.c.h.b16 %v34
  %v55 = vunpack.c.l.b16 %v35
  %v56 = vunpack.c.h.b16 %v35
  %v57 = vunpack.c.l.b16 %v36
  %v58 = vunpack.c.h.b16 %v36
  %v59 = vunpack.c.l.b16 %v37
  %v60 = vunpack.c.h.b16 %v37
  %v61 = vpack.c.b16 %v55, %v53
  %v62 = vpack.c.b16 %v56, %v54
  %v63 = vpack.c.b16 %v59, %v57
  %v64 = vpack.c.b16 %v60, %v58
  %vm69 = vcmask 261120
  %v71 = vsel %vm69, %v48, 0
  %73 = vmatpush.bf16.msra.mxu0 0
  %74 = vmatpush.bf16.msra.mxu0 0
  %75 = vmatpush.bf16.msra.mxu0 0
  %76 = vmatpush.bf16.msra.mxu0 0
  %77 = vmatpush.bf16.msra.mxu0 0
  %78 = vmatpush.bf16.msra.mxu0 0
  %79 = vmatpush.bf16.msra.mxu0 %v63
  %80 = vmatpush.bf16.msra.mxu0 %v61
  %81 = vmatmul.bf16.gmra.mxu0 %v71
  %v82 = vpop.f32.mrf.mxu0
  %v83 = vadd.f32 %v40, %v82
  %v84 = vpop.f32.mrf.mxu0
  %v85 = vadd.f32 %v40, %v84
  %86 = vdwg.mxu0
  %87 = vmatpush.bf16.msra.mxu0 0
  %88 = vmatpush.bf16.msra.mxu0 0
  %89 = vmatpush.bf16.msra.mxu0 0
  %90 = vmatpush.bf16.msra.mxu0 0
  %91 = vmatpush.bf16.msra.mxu0 0
  %92 = vmatpush.bf16.msra.mxu0 0
  %93 = vmatpush.bf16.msra.mxu0 %v64
  %94 = vmatpush.bf16.msra.mxu0 %v62
  %95 = vmatmul.bf16.gmra.mxu0 %v71
  %v96 = vpop.f32.mrf.mxu0
  %v97 = vadd.f32 %v41, %v96
  %v98 = vpop.f32.mrf.mxu0
  %v99 = vadd.f32 %v41, %v98
  %100 = vdwg.mxu0
  %v101 = vld [vmem:[%s2] sm:$0xff]
  %v102 = vld [vmem:[%s2 + $0x8] sm:$0xff]
  %v103 = vld [vmem:[%s2 + $0x10] sm:$0xff]
  %v104 = vld [vmem:[%s2 + $0x18] sm:$0xff]
  %v105 = vld [vmem:[%s2 + $0x20] sm:$0xff]
  %v106 = vld [vmem:[%s2 + $0x28] sm:$0xff]
  %v107 = vld [vmem:[%s2 + $0x30] sm:$0xff]
  %v108 = vld [vmem:[%s2 + $0x38] sm:$0xff]
  %v109 = vlaneseq
  %v110 = vand.u32 %v109, 127
  %v111 = vadd.s32 %v110, 128
  %vm112 = vcmp.lt.s32.totalorder %v110, 0
  %v113 = vsub.s32 0, %v110
  %v114 = vsel %vm112, %v113, %v110
  %v115 = vshrl.u32 %v114, 6
  %v116 = vand.u32 %v114, 63
  %v117 = vsub.s32 0, %v116
  %v118 = vsel %vm112, %v117, %v116
  %vm119 = vcmp.lt.s32.totalorder %v111, 0
  %v120 = vsub.s32 0, %v111
  %v121 = vsel %vm119, %v120, %v111
  %v122 = vshrl.u32 %v121, 6
  %v123 = vand.u32 %v121, 63
  %v124 = vsub.s32 0, %v123
  %v125 = vsel %vm119, %v124, %v123
  %vm126 = vcmp.ne.s32.totalorder %v118, 0
  %vm127 = vcmp.ne.s32.totalorder %v125, 0
  %vm128 = vcmp.lt.s32.totalorder %v118, 0
  %vm129 = vcmp.lt.s32.totalorder %v125, 0
  %vm130 = vmand %vm128, %vm126
  %vm131 = vmand %vm129, %vm127
  %v132 = vadd.s32 %v118, 64
  %v133 = vadd.s32 %v125, 64
  %v134 = vsel %vm130, %v132, %v118
  %v135 = vsel %vm131, %v133, %v125
  %vm136 = vcmp.lt.s32.totalorder %v134, 32
  %vm137 = vcmp.lt.s32.totalorder %v135, 32
  %v138 = vsel %vm136, 1, 0
  %v139 = vsel %vm137, 1, 0
  %vm140 = vcmp.eq.s32.totalorder %v138, 1
  %vm141 = vcmp.eq.s32.totalorder %v139, 1
  %v146 = vrot.slane %v85, 7
  %vm147 = vcmask 1041409
  %v148 = vsel %vm147, %v146, %v83
  %v149 = vrot.slane %v99, 7
  %v150 = vsel %vm147, %v149, %v97
  %v153 = vrot.slane %v83, 7
  %v154 = vrot.slane %v85, 6
  %v155 = vsel %vm147, %v154, %v153
  %v156 = vrot.slane %v97, 7
  %v157 = vrot.slane %v99, 6
  %v158 = vsel %vm147, %v157, %v156
  %v161 = vsel %vm140, %v148, %v155
  %v162 = vsel %vm141, %v150, %v158
  %v163 = vrot.slane %v83, 1
  %v164 = vsel %vm147, %v85, %v163
  %v165 = vrot.slane %v97, 1
  %v166 = vsel %vm147, %v99, %v165
  %v169 = vrot.slane %v83, 6
  %v170 = vrot.slane %v85, 5
  %v171 = vsel %vm147, %v170, %v169
  %v172 = vrot.slane %v97, 6
  %v173 = vrot.slane %v99, 5
  %v174 = vsel %vm147, %v173, %v172
  %v177 = vsel %vm140, %v164, %v171
  %v178 = vsel %vm141, %v166, %v174
  %v179 = vrot.slane %v83, 2
  %v180 = vrot.slane %v85, 1
  %v181 = vsel %vm147, %v180, %v179
  %v182 = vrot.slane %v97, 2
  %v183 = vrot.slane %v99, 1
  %v184 = vsel %vm147, %v183, %v182
  %v187 = vrot.slane %v83, 5
  %v188 = vrot.slane %v85, 4
  %v189 = vsel %vm147, %v188, %v187
  %v190 = vrot.slane %v97, 5
  %v191 = vrot.slane %v99, 4
  %v192 = vsel %vm147, %v191, %v190
  %v195 = vsel %vm140, %v181, %v189
  %v196 = vsel %vm141, %v184, %v192
  %v197 = vrot.slane %v83, 3
  %v198 = vrot.slane %v85, 2
  %v199 = vsel %vm147, %v198, %v197
  %v200 = vrot.slane %v97, 3
  %v201 = vrot.slane %v99, 2
  %v202 = vsel %vm147, %v201, %v200
  %v205 = vrot.slane %v83, 4
  %v206 = vrot.slane %v85, 3
  %v207 = vsel %vm147, %v206, %v205
  %v208 = vrot.slane %v97, 4
  %v209 = vrot.slane %v99, 3
  %v210 = vsel %vm147, %v209, %v208
  %v213 = vsel %vm140, %v199, %v207
  %v214 = vsel %vm141, %v202, %v210
  %v215 = vsel %vm140, %v207, %v199
  %v216 = vsel %vm141, %v210, %v202
  %v217 = vsel %vm140, %v189, %v181
  %v218 = vsel %vm141, %v192, %v184
  %v219 = vsel %vm140, %v171, %v164
  %v220 = vsel %vm141, %v174, %v166
  %v221 = vsel %vm140, %v155, %v148
  %v222 = vsel %vm141, %v158, %v150
  %v231 = vunpack.c.l.b16 %v101
  %v232 = vunpack.c.h.b16 %v101
  %v233 = vunpack.c.l.b16 %v102
  %v234 = vunpack.c.h.b16 %v102
  %v235 = vunpack.c.l.b16 %v103
  %v236 = vunpack.c.h.b16 %v103
  %v237 = vunpack.c.l.b16 %v104
  %v238 = vunpack.c.h.b16 %v104
  %v239 = vunpack.c.l.b16 %v105
  %v240 = vunpack.c.h.b16 %v105
  %v241 = vunpack.c.l.b16 %v106
  %v242 = vunpack.c.h.b16 %v106
  %v243 = vunpack.c.l.b16 %v107
  %v244 = vunpack.c.h.b16 %v107
  %v245 = vunpack.c.l.b16 %v108
  %v246 = vunpack.c.h.b16 %v108
  %v247 = vpack.c.b16 %v233, %v231
  %v248 = vpack.c.b16 %v234, %v232
  %v249 = vpack.c.b16 %v237, %v235
  %v250 = vpack.c.b16 %v238, %v236
  %v251 = vpack.c.b16 %v241, %v239
  %v252 = vpack.c.b16 %v242, %v240
  %v253 = vpack.c.b16 %v245, %v243
  %v254 = vpack.c.b16 %v246, %v244
  %vm263 = vcmask 523264
  %v265 = vsel %vm263, 0, 0
  %267 = vmatpush.bf16.msra.mxu0 0
  %268 = vmatpush.bf16.msra.mxu0 0
  %269 = vmatpush.bf16.msra.mxu0 0
  %270 = vmatpush.bf16.msra.mxu0 0
  %271 = vmatpush.bf16.msra.mxu0 %v253
  %272 = vmatpush.bf16.msra.mxu0 %v251
  %273 = vmatpush.bf16.msra.mxu0 %v249
  %274 = vmatpush.bf16.msra.mxu0 %v247
  %275 = vmatmul.bf16.gmra.mxu0 %v265
  %v276 = vpop.f32.mrf.mxu0
  %v277 = vadd.f32 0.0, %v276
  %v278 = vpop.f32.mrf.mxu0
  %279 = vdwg.mxu0
  %280 = vmatpush.bf16.msra.mxu0 0
  %281 = vmatpush.bf16.msra.mxu0 0
  %282 = vmatpush.bf16.msra.mxu0 0
  %283 = vmatpush.bf16.msra.mxu0 0
  %284 = vmatpush.bf16.msra.mxu0 %v254
  %285 = vmatpush.bf16.msra.mxu0 %v252
  %286 = vmatpush.bf16.msra.mxu0 %v250
  %287 = vmatpush.bf16.msra.mxu0 %v248
  %288 = vmatmul.bf16.gmra.mxu0 %v265
  %v289 = vpop.f32.mrf.mxu0
  %v290 = vadd.f32 0.0, %v289
  %v291 = vpop.f32.mrf.mxu0
  %292 = vdwg.mxu0
  %v293 = vadd.f32 %v161, %v277
  %v294 = vadd.f32 %v162, %v290
  %v295 = vxor.u32 %v293, 2147483648
  %v296 = vxor.u32 %v294, 2147483648
  %v297 = vmul.f32 %v295, 1.442695
  %v298 = vpow.pop %v297
  %v299 = vmul.f32 %v296, 1.442695
  %v300 = vpow.pop %v299
  %v301 = vadd.f32 %v298, 1.0
  %v302 = vadd.f32 %v300, 1.0
  %v303 = vrcp.pop %v301
  %v304 = vmul.f32 %v301, %v303
  %v305 = vsub.f32 1.0, %v304
  %v306 = vmul.f32 %v303, %v305
  %v307 = vadd.f32 %v303, %v306
  %vm308 = vweird.f32 %v301
  %vm309 = vweird.f32 %v303
  %vm310 = vmor %vm308, %vm309
  %v311 = vsel %vm310, %v303, %v307
  %v312 = vand.u32 2147483647, %v301
  %vm313 = vcmp.eq.f32.partialorder %v312, 8.507059e+37
  %v314 = vand.u32 %v301, 2147483648
  %v315 = vor.u32 1.1754944e-38, %v314
  %v316 = vsel %vm313, %v315, %v311
  %v317 = vmul.f32 1.0, %v316
  %v318 = vrcp.pop %v302
  %v319 = vmul.f32 %v302, %v318
  %v320 = vsub.f32 1.0, %v319
  %v321 = vmul.f32 %v318, %v320
  %v322 = vadd.f32 %v318, %v321
  %vm323 = vweird.f32 %v302
  %vm324 = vweird.f32 %v318
  %vm325 = vmor %vm323, %vm324
  %v326 = vsel %vm325, %v318, %v322
  %v327 = vand.u32 2147483647, %v302
  %vm328 = vcmp.eq.f32.partialorder %v327, 8.507059e+37
  %v329 = vand.u32 %v302, 2147483648
  %v330 = vor.u32 1.1754944e-38, %v329
  %v331 = vsel %vm328, %v330, %v326
  %v332 = vmul.f32 1.0, %v331
  %v333 = vtanh.pop %v294
  %v334 = vmul.f32 %v317, 0.0
  %v335 = vmul.f32 %v317, %v333
  %337 = vrot.lane.b32.xlu0 %v335, 64
  %v338 = vpop.permute.xlu0 %337
  %v340 = vadd.f32 %v334, %v338
  %v341 = vtanh.pop %v340
  %v342 = vmul.f32 %v332, %v341
  %v343 = vpack.c.bf16 %v342, %v342
  %345 = vrot.lane.b32.xlu0 %v343, 64
  %v346 = vpop.permute.xlu0 %345
  %v348 = vsel %vm263, %v346, 0
  %350 = vmatpush.bf16.msra.mxu0 0
  %351 = vmatpush.bf16.msra.mxu0 0
  %352 = vmatpush.bf16.msra.mxu0 0
  %353 = vmatpush.bf16.msra.mxu0 0
  %354 = vmatpush.bf16.msra.mxu0 %v253
  %355 = vmatpush.bf16.msra.mxu0 %v251
  %356 = vmatpush.bf16.msra.mxu0 %v249
  %357 = vmatpush.bf16.msra.mxu0 %v247
  %358 = vmatmul.bf16.gmra.mxu0 %v348
  %v359 = vpop.f32.mrf.mxu0
  %v360 = vadd.f32 0.0, %v359
  %v361 = vpop.f32.mrf.mxu0
  %362 = vdwg.mxu0
  %363 = vmatpush.bf16.msra.mxu0 0
  %364 = vmatpush.bf16.msra.mxu0 0
  %365 = vmatpush.bf16.msra.mxu0 0
  %366 = vmatpush.bf16.msra.mxu0 0
  %367 = vmatpush.bf16.msra.mxu0 %v254
  %368 = vmatpush.bf16.msra.mxu0 %v252
  %369 = vmatpush.bf16.msra.mxu0 %v250
  %370 = vmatpush.bf16.msra.mxu0 %v248
  %371 = vmatmul.bf16.gmra.mxu0 %v348
  %v372 = vpop.f32.mrf.mxu0
  %v373 = vadd.f32 0.0, %v372
  %v374 = vpop.f32.mrf.mxu0
  %375 = vdwg.mxu0
  %v376 = vadd.f32 %v177, %v360
  %v377 = vadd.f32 %v178, %v373
  %v378 = vxor.u32 %v376, 2147483648
  %v379 = vxor.u32 %v377, 2147483648
  %v380 = vmul.f32 %v378, 1.442695
  %v381 = vpow.pop %v380
  %v382 = vmul.f32 %v379, 1.442695
  %v383 = vpow.pop %v382
  %v384 = vadd.f32 %v381, 1.0
  %v385 = vadd.f32 %v383, 1.0
  %v386 = vrcp.pop %v384
  %v387 = vmul.f32 %v384, %v386
  %v388 = vsub.f32 1.0, %v387
  %v389 = vmul.f32 %v386, %v388
  %v390 = vadd.f32 %v386, %v389
  %vm391 = vweird.f32 %v384
  %vm392 = vweird.f32 %v386
  %vm393 = vmor %vm391, %vm392
  %v394 = vsel %vm393, %v386, %v390
  %v395 = vand.u32 2147483647, %v384
  %vm396 = vcmp.eq.f32.partialorder %v395, 8.507059e+37
  %v397 = vand.u32 %v384, 2147483648
  %v398 = vor.u32 1.1754944e-38, %v397
  %v399 = vsel %vm396, %v398, %v394
  %v400 = vmul.f32 1.0, %v399
  %v401 = vrcp.pop %v385
  %v402 = vmul.f32 %v385, %v401
  %v403 = vsub.f32 1.0, %v402
  %v404 = vmul.f32 %v401, %v403
  %v405 = vadd.f32 %v401, %v404
  %vm406 = vweird.f32 %v385
  %vm407 = vweird.f32 %v401
  %vm408 = vmor %vm406, %vm407
  %v409 = vsel %vm408, %v401, %v405
  %v410 = vand.u32 2147483647, %v385
  %vm411 = vcmp.eq.f32.partialorder %v410, 8.507059e+37
  %v412 = vand.u32 %v385, 2147483648
  %v413 = vor.u32 1.1754944e-38, %v412
  %v414 = vsel %vm411, %v413, %v409
  %v415 = vmul.f32 1.0, %v414
  %v416 = vtanh.pop %v377
  %v417 = vmul.f32 %v400, %v340
  %v418 = vmul.f32 %v400, %v416
  %420 = vrot.lane.b32.xlu0 %v418, 64
  %v421 = vpop.permute.xlu0 %420
  %v423 = vadd.f32 %v417, %v421
  %v424 = vtanh.pop %v423
  %v425 = vmul.f32 %v415, %v424
  %v426 = vpack.c.bf16 %v425, %v425
  %428 = vrot.lane.b32.xlu0 %v426, 64
  %v429 = vpop.permute.xlu0 %428
  %v431 = vsel %vm263, %v429, 0
  %433 = vmatpush.bf16.msra.mxu0 0
  %434 = vmatpush.bf16.msra.mxu0 0
  %435 = vmatpush.bf16.msra.mxu0 0
  %436 = vmatpush.bf16.msra.mxu0 0
  %437 = vmatpush.bf16.msra.mxu0 %v253
  %438 = vmatpush.bf16.msra.mxu0 %v251
  %439 = vmatpush.bf16.msra.mxu0 %v249
  %440 = vmatpush.bf16.msra.mxu0 %v247
  %441 = vmatmul.bf16.gmra.mxu0 %v431
  %v442 = vpop.f32.mrf.mxu0
  %v443 = vadd.f32 0.0, %v442
  %v444 = vpop.f32.mrf.mxu0
  %445 = vdwg.mxu0
  %446 = vmatpush.bf16.msra.mxu0 0
  %447 = vmatpush.bf16.msra.mxu0 0
  %448 = vmatpush.bf16.msra.mxu0 0
  %449 = vmatpush.bf16.msra.mxu0 0
  %450 = vmatpush.bf16.msra.mxu0 %v254
  %451 = vmatpush.bf16.msra.mxu0 %v252
  %452 = vmatpush.bf16.msra.mxu0 %v250
  %453 = vmatpush.bf16.msra.mxu0 %v248
  %454 = vmatmul.bf16.gmra.mxu0 %v431
  %v455 = vpop.f32.mrf.mxu0
  %v456 = vadd.f32 0.0, %v455
  %v457 = vpop.f32.mrf.mxu0
  %458 = vdwg.mxu0
  %v459 = vadd.f32 %v195, %v443
  %v460 = vadd.f32 %v196, %v456
  %v461 = vxor.u32 %v459, 2147483648
  %v462 = vxor.u32 %v460, 2147483648
  %v463 = vmul.f32 %v461, 1.442695
  %v464 = vpow.pop %v463
  %v465 = vmul.f32 %v462, 1.442695
  %v466 = vpow.pop %v465
  %v467 = vadd.f32 %v464, 1.0
  %v468 = vadd.f32 %v466, 1.0
  %v469 = vrcp.pop %v467
  %v470 = vmul.f32 %v467, %v469
  %v471 = vsub.f32 1.0, %v470
  %v472 = vmul.f32 %v469, %v471
  %v473 = vadd.f32 %v469, %v472
  %vm474 = vweird.f32 %v467
  %vm475 = vweird.f32 %v469
  %vm476 = vmor %vm474, %vm475
  %v477 = vsel %vm476, %v469, %v473
  %v478 = vand.u32 2147483647, %v467
  %vm479 = vcmp.eq.f32.partialorder %v478, 8.507059e+37
  %v480 = vand.u32 %v467, 2147483648
  %v481 = vor.u32 1.1754944e-38, %v480
  %v482 = vsel %vm479, %v481, %v477
  %v483 = vmul.f32 1.0, %v482
  %v484 = vrcp.pop %v468
  %v485 = vmul.f32 %v468, %v484
  %v486 = vsub.f32 1.0, %v485
  %v487 = vmul.f32 %v484, %v486
  %v488 = vadd.f32 %v484, %v487
  %vm489 = vweird.f32 %v468
  %vm490 = vweird.f32 %v484
  %vm491 = vmor %vm489, %vm490
  %v492 = vsel %vm491, %v484, %v488
  %v493 = vand.u32 2147483647, %v468
  %vm494 = vcmp.eq.f32.partialorder %v493, 8.507059e+37
  %v495 = vand.u32 %v468, 2147483648
  %v496 = vor.u32 1.1754944e-38, %v495
  %v497 = vsel %vm494, %v496, %v492
  %v498 = vmul.f32 1.0, %v497
  %v499 = vtanh.pop %v460
  %v500 = vmul.f32 %v483, %v423
  %v501 = vmul.f32 %v483, %v499
  %503 = vrot.lane.b32.xlu0 %v501, 64
  %v504 = vpop.permute.xlu0 %503
  %v506 = vadd.f32 %v500, %v504
  %v507 = vtanh.pop %v506
  %v508 = vmul.f32 %v498, %v507
  %v509 = vpack.c.bf16 %v508, %v508
  %511 = vrot.lane.b32.xlu0 %v509, 64
  %v512 = vpop.permute.xlu0 %511
  %v514 = vsel %vm263, %v512, 0
  %516 = vmatpush.bf16.msra.mxu0 0
  %517 = vmatpush.bf16.msra.mxu0 0
  %518 = vmatpush.bf16.msra.mxu0 0
  %519 = vmatpush.bf16.msra.mxu0 0
  %520 = vmatpush.bf16.msra.mxu0 %v253
  %521 = vmatpush.bf16.msra.mxu0 %v251
  %522 = vmatpush.bf16.msra.mxu0 %v249
  %523 = vmatpush.bf16.msra.mxu0 %v247
  %524 = vmatmul.bf16.gmra.mxu0 %v514
  %v525 = vpop.f32.mrf.mxu0
  %v526 = vadd.f32 0.0, %v525
  %v527 = vpop.f32.mrf.mxu0
  %528 = vdwg.mxu0
  %529 = vmatpush.bf16.msra.mxu0 0
  %530 = vmatpush.bf16.msra.mxu0 0
  %531 = vmatpush.bf16.msra.mxu0 0
  %532 = vmatpush.bf16.msra.mxu0 0
  %533 = vmatpush.bf16.msra.mxu0 %v254
  %534 = vmatpush.bf16.msra.mxu0 %v252
  %535 = vmatpush.bf16.msra.mxu0 %v250
  %536 = vmatpush.bf16.msra.mxu0 %v248
  %537 = vmatmul.bf16.gmra.mxu0 %v514
  %v538 = vpop.f32.mrf.mxu0
  %v539 = vadd.f32 0.0, %v538
  %v540 = vpop.f32.mrf.mxu0
  %541 = vdwg.mxu0
  %v542 = vadd.f32 %v213, %v526
  %v543 = vadd.f32 %v214, %v539
  %v544 = vxor.u32 %v542, 2147483648
  %v545 = vxor.u32 %v543, 2147483648
  %v546 = vmul.f32 %v544, 1.442695
  %v547 = vpow.pop %v546
  %v548 = vmul.f32 %v545, 1.442695
  %v549 = vpow.pop %v548
  %v550 = vadd.f32 %v547, 1.0
  %v551 = vadd.f32 %v549, 1.0
  %v552 = vrcp.pop %v550
  %v553 = vmul.f32 %v550, %v552
  %v554 = vsub.f32 1.0, %v553
  %v555 = vmul.f32 %v552, %v554
  %v556 = vadd.f32 %v552, %v555
  %vm557 = vweird.f32 %v550
  %vm558 = vweird.f32 %v552
  %vm559 = vmor %vm557, %vm558
  %v560 = vsel %vm559, %v552, %v556
  %v561 = vand.u32 2147483647, %v550
  %vm562 = vcmp.eq.f32.partialorder %v561, 8.507059e+37
  %v563 = vand.u32 %v550, 2147483648
  %v564 = vor.u32 1.1754944e-38, %v563
  %v565 = vsel %vm562, %v564, %v560
  %v566 = vmul.f32 1.0, %v565
  %v567 = vrcp.pop %v551
  %v568 = vmul.f32 %v551, %v567
  %v569 = vsub.f32 1.0, %v568
  %v570 = vmul.f32 %v567, %v569
  %v571 = vadd.f32 %v567, %v570
  %vm572 = vweird.f32 %v551
  %vm573 = vweird.f32 %v567
  %vm574 = vmor %vm572, %vm573
  %v575 = vsel %vm574, %v567, %v571
  %v576 = vand.u32 2147483647, %v551
  %vm577 = vcmp.eq.f32.partialorder %v576, 8.507059e+37
  %v578 = vand.u32 %v551, 2147483648
  %v579 = vor.u32 1.1754944e-38, %v578
  %v580 = vsel %vm577, %v579, %v575
  %v581 = vmul.f32 1.0, %v580
  %v582 = vtanh.pop %v543
  %v583 = vmul.f32 %v566, %v506
  %v584 = vmul.f32 %v566, %v582
  %586 = vrot.lane.b32.xlu0 %v584, 64
  %v587 = vpop.permute.xlu0 %586
  %v589 = vadd.f32 %v583, %v587
  %v590 = vtanh.pop %v589
  %v591 = vmul.f32 %v581, %v590
  %v592 = vpack.c.bf16 %v591, %v591
  %594 = vrot.lane.b32.xlu0 %v592, 64
  %v595 = vpop.permute.xlu0 %594
  %v597 = vsel %vm263, %v595, 0
  %599 = vmatpush.bf16.msra.mxu0 0
  %600 = vmatpush.bf16.msra.mxu0 0
  %601 = vmatpush.bf16.msra.mxu0 0
  %602 = vmatpush.bf16.msra.mxu0 0
  %603 = vmatpush.bf16.msra.mxu0 %v253
  %604 = vmatpush.bf16.msra.mxu0 %v251
  %605 = vmatpush.bf16.msra.mxu0 %v249
  %606 = vmatpush.bf16.msra.mxu0 %v247
  %607 = vmatmul.bf16.gmra.mxu0 %v597
  %v608 = vpop.f32.mrf.mxu0
  %v609 = vadd.f32 0.0, %v608
  %v610 = vpop.f32.mrf.mxu0
  %611 = vdwg.mxu0
  %612 = vmatpush.bf16.msra.mxu0 0
  %613 = vmatpush.bf16.msra.mxu0 0
  %614 = vmatpush.bf16.msra.mxu0 0
  %615 = vmatpush.bf16.msra.mxu0 0
  %616 = vmatpush.bf16.msra.mxu0 %v254
  %617 = vmatpush.bf16.msra.mxu0 %v252
  %618 = vmatpush.bf16.msra.mxu0 %v250
  %619 = vmatpush.bf16.msra.mxu0 %v248
  %620 = vmatmul.bf16.gmra.mxu0 %v597
  %v621 = vpop.f32.mrf.mxu0
  %v622 = vadd.f32 0.0, %v621
  %v623 = vpop.f32.mrf.mxu0
  %624 = vdwg.mxu0
  %v625 = vadd.f32 %v215, %v609
  %v626 = vadd.f32 %v216, %v622
  %v627 = vxor.u32 %v625, 2147483648
  %v628 = vxor.u32 %v626, 2147483648
  %v629 = vmul.f32 %v627, 1.442695
  %v630 = vpow.pop %v629
  %v631 = vmul.f32 %v628, 1.442695
  %v632 = vpow.pop %v631
  %v633 = vadd.f32 %v630, 1.0
  %v634 = vadd.f32 %v632, 1.0
  %v635 = vrcp.pop %v633
  %v636 = vmul.f32 %v633, %v635
  %v637 = vsub.f32 1.0, %v636
  %v638 = vmul.f32 %v635, %v637
  %v639 = vadd.f32 %v635, %v638
  %vm640 = vweird.f32 %v633
  %vm641 = vweird.f32 %v635
  %vm642 = vmor %vm640, %vm641
  %v643 = vsel %vm642, %v635, %v639
  %v644 = vand.u32 2147483647, %v633
  %vm645 = vcmp.eq.f32.partialorder %v644, 8.507059e+37
  %v646 = vand.u32 %v633, 2147483648
  %v647 = vor.u32 1.1754944e-38, %v646
  %v648 = vsel %vm645, %v647, %v643
  %v649 = vmul.f32 1.0, %v648
  %v650 = vrcp.pop %v634
  %v651 = vmul.f32 %v634, %v650
  %v652 = vsub.f32 1.0, %v651
  %v653 = vmul.f32 %v650, %v652
  %v654 = vadd.f32 %v650, %v653
  %vm655 = vweird.f32 %v634
  %vm656 = vweird.f32 %v650
  %vm657 = vmor %vm655, %vm656
  %v658 = vsel %vm657, %v650, %v654
  %v659 = vand.u32 2147483647, %v634
  %vm660 = vcmp.eq.f32.partialorder %v659, 8.507059e+37
  %v661 = vand.u32 %v634, 2147483648
  %v662 = vor.u32 1.1754944e-38, %v661
  %v663 = vsel %vm660, %v662, %v658
  %v664 = vmul.f32 1.0, %v663
  %v665 = vtanh.pop %v626
  %v666 = vmul.f32 %v649, %v589
  %v667 = vmul.f32 %v649, %v665
  %669 = vrot.lane.b32.xlu0 %v667, 64
  %v670 = vpop.permute.xlu0 %669
  %v672 = vadd.f32 %v666, %v670
  %v673 = vtanh.pop %v672
  %v674 = vmul.f32 %v664, %v673
  %v675 = vpack.c.bf16 %v674, %v674
  %677 = vrot.lane.b32.xlu0 %v675, 64
  %v678 = vpop.permute.xlu0 %677
  %v680 = vsel %vm263, %v678, 0
  %682 = vmatpush.bf16.msra.mxu0 0
  %683 = vmatpush.bf16.msra.mxu0 0
  %684 = vmatpush.bf16.msra.mxu0 0
  %685 = vmatpush.bf16.msra.mxu0 0
  %686 = vmatpush.bf16.msra.mxu0 %v253
  %687 = vmatpush.bf16.msra.mxu0 %v251
  %688 = vmatpush.bf16.msra.mxu0 %v249
  %689 = vmatpush.bf16.msra.mxu0 %v247
  %690 = vmatmul.bf16.gmra.mxu0 %v680
  %v691 = vpop.f32.mrf.mxu0
  %v692 = vadd.f32 0.0, %v691
  %v693 = vpop.f32.mrf.mxu0
  %694 = vdwg.mxu0
  %695 = vmatpush.bf16.msra.mxu0 0
  %696 = vmatpush.bf16.msra.mxu0 0
  %697 = vmatpush.bf16.msra.mxu0 0
  %698 = vmatpush.bf16.msra.mxu0 0
  %699 = vmatpush.bf16.msra.mxu0 %v254
  %700 = vmatpush.bf16.msra.mxu0 %v252
  %701 = vmatpush.bf16.msra.mxu0 %v250
  %702 = vmatpush.bf16.msra.mxu0 %v248
  %703 = vmatmul.bf16.gmra.mxu0 %v680
  %v704 = vpop.f32.mrf.mxu0
  %v705 = vadd.f32 0.0, %v704
  %v706 = vpop.f32.mrf.mxu0
  %707 = vdwg.mxu0
  %v708 = vadd.f32 %v217, %v692
  %v709 = vadd.f32 %v218, %v705
  %v710 = vxor.u32 %v708, 2147483648
  %v711 = vxor.u32 %v709, 2147483648
  %v712 = vmul.f32 %v710, 1.442695
  %v713 = vpow.pop %v712
  %v714 = vmul.f32 %v711, 1.442695
  %v715 = vpow.pop %v714
  %v716 = vadd.f32 %v713, 1.0
  %v717 = vadd.f32 %v715, 1.0
  %v718 = vrcp.pop %v716
  %v719 = vmul.f32 %v716, %v718
  %v720 = vsub.f32 1.0, %v719
  %v721 = vmul.f32 %v718, %v720
  %v722 = vadd.f32 %v718, %v721
  %vm723 = vweird.f32 %v716
  %vm724 = vweird.f32 %v718
  %vm725 = vmor %vm723, %vm724
  %v726 = vsel %vm725, %v718, %v722
  %v727 = vand.u32 2147483647, %v716
  %vm728 = vcmp.eq.f32.partialorder %v727, 8.507059e+37
  %v729 = vand.u32 %v716, 2147483648
  %v730 = vor.u32 1.1754944e-38, %v729
  %v731 = vsel %vm728, %v730, %v726
  %v732 = vmul.f32 1.0, %v731
  %v733 = vrcp.pop %v717
  %v734 = vmul.f32 %v717, %v733
  %v735 = vsub.f32 1.0, %v734
  %v736 = vmul.f32 %v733, %v735
  %v737 = vadd.f32 %v733, %v736
  %vm738 = vweird.f32 %v717
  %vm739 = vweird.f32 %v733
  %vm740 = vmor %vm738, %vm739
  %v741 = vsel %vm740, %v733, %v737
  %v742 = vand.u32 2147483647, %v717
  %vm743 = vcmp.eq.f32.partialorder %v742, 8.507059e+37
  %v744 = vand.u32 %v717, 2147483648
  %v745 = vor.u32 1.1754944e-38, %v744
  %v746 = vsel %vm743, %v745, %v741
  %v747 = vmul.f32 1.0, %v746
  %v748 = vtanh.pop %v709
  %v749 = vmul.f32 %v732, %v672
  %v750 = vmul.f32 %v732, %v748
  %752 = vrot.lane.b32.xlu0 %v750, 64
  %v753 = vpop.permute.xlu0 %752
  %v755 = vadd.f32 %v749, %v753
  %v756 = vtanh.pop %v755
  %v757 = vmul.f32 %v747, %v756
  %v758 = vpack.c.bf16 %v757, %v757
  %760 = vrot.lane.b32.xlu0 %v758, 64
  %v761 = vpop.permute.xlu0 %760
  %v763 = vsel %vm263, %v761, 0
  %765 = vmatpush.bf16.msra.mxu0 0
  %766 = vmatpush.bf16.msra.mxu0 0
  %767 = vmatpush.bf16.msra.mxu0 0
  %768 = vmatpush.bf16.msra.mxu0 0
  %769 = vmatpush.bf16.msra.mxu0 %v253
  %770 = vmatpush.bf16.msra.mxu0 %v251
  %771 = vmatpush.bf16.msra.mxu0 %v249
  %772 = vmatpush.bf16.msra.mxu0 %v247
  %773 = vmatmul.bf16.gmra.mxu0 %v763
  %v774 = vpop.f32.mrf.mxu0
  %v775 = vadd.f32 0.0, %v774
  %v776 = vpop.f32.mrf.mxu0
  %777 = vdwg.mxu0
  %778 = vmatpush.bf16.msra.mxu0 0
  %779 = vmatpush.bf16.msra.mxu0 0
  %780 = vmatpush.bf16.msra.mxu0 0
  %781 = vmatpush.bf16.msra.mxu0 0
  %782 = vmatpush.bf16.msra.mxu0 %v254
  %783 = vmatpush.bf16.msra.mxu0 %v252
  %784 = vmatpush.bf16.msra.mxu0 %v250
  %785 = vmatpush.bf16.msra.mxu0 %v248
  %786 = vmatmul.bf16.gmra.mxu0 %v763
  %v787 = vpop.f32.mrf.mxu0
  %v788 = vadd.f32 0.0, %v787
  %v789 = vpop.f32.mrf.mxu0
  %790 = vdwg.mxu0
  %v791 = vadd.f32 %v219, %v775
  %v792 = vadd.f32 %v220, %v788
  %v793 = vxor.u32 %v791, 2147483648
  %v794 = vxor.u32 %v792, 2147483648
  %v795 = vmul.f32 %v793, 1.442695
  %v796 = vpow.pop %v795
  %v797 = vmul.f32 %v794, 1.442695
  %v798 = vpow.pop %v797
  %v799 = vadd.f32 %v796, 1.0
  %v800 = vadd.f32 %v798, 1.0
  %v801 = vrcp.pop %v799
  %v802 = vmul.f32 %v799, %v801
  %v803 = vsub.f32 1.0, %v802
  %v804 = vmul.f32 %v801, %v803
  %v805 = vadd.f32 %v801, %v804
  %vm806 = vweird.f32 %v799
  %vm807 = vweird.f32 %v801
  %vm808 = vmor %vm806, %vm807
  %v809 = vsel %vm808, %v801, %v805
  %v810 = vand.u32 2147483647, %v799
  %vm811 = vcmp.eq.f32.partialorder %v810, 8.507059e+37
  %v812 = vand.u32 %v799, 2147483648
  %v813 = vor.u32 1.1754944e-38, %v812
  %v814 = vsel %vm811, %v813, %v809
  %v815 = vmul.f32 1.0, %v814
  %v816 = vrcp.pop %v800
  %v817 = vmul.f32 %v800, %v816
  %v818 = vsub.f32 1.0, %v817
  %v819 = vmul.f32 %v816, %v818
  %v820 = vadd.f32 %v816, %v819
  %vm821 = vweird.f32 %v800
  %vm822 = vweird.f32 %v816
  %vm823 = vmor %vm821, %vm822
  %v824 = vsel %vm823, %v816, %v820
  %v825 = vand.u32 2147483647, %v800
  %vm826 = vcmp.eq.f32.partialorder %v825, 8.507059e+37
  %v827 = vand.u32 %v800, 2147483648
  %v828 = vor.u32 1.1754944e-38, %v827
  %v829 = vsel %vm826, %v828, %v824
  %v830 = vmul.f32 1.0, %v829
  %v831 = vtanh.pop %v792
  %v832 = vmul.f32 %v815, %v755
  %v833 = vmul.f32 %v815, %v831
  %835 = vrot.lane.b32.xlu0 %v833, 64
  %v836 = vpop.permute.xlu0 %835
  %v838 = vadd.f32 %v832, %v836
  %v839 = vtanh.pop %v838
  %v840 = vmul.f32 %v830, %v839
  %v841 = vpack.c.bf16 %v840, %v840
  %843 = vrot.lane.b32.xlu0 %v841, 64
  %v844 = vpop.permute.xlu0 %843
  %v846 = vsel %vm263, %v844, 0
  %848 = vmatpush.bf16.msra.mxu0 0
  %849 = vmatpush.bf16.msra.mxu0 0
  %850 = vmatpush.bf16.msra.mxu0 0
  %851 = vmatpush.bf16.msra.mxu0 0
  %852 = vmatpush.bf16.msra.mxu0 %v253
  %853 = vmatpush.bf16.msra.mxu0 %v251
  %854 = vmatpush.bf16.msra.mxu0 %v249
  %855 = vmatpush.bf16.msra.mxu0 %v247
  %856 = vmatmul.bf16.gmra.mxu0 %v846
  %v857 = vpop.f32.mrf.mxu0
  %v858 = vadd.f32 0.0, %v857
  %v859 = vpop.f32.mrf.mxu0
  %860 = vdwg.mxu0
  %861 = vmatpush.bf16.msra.mxu0 0
  %862 = vmatpush.bf16.msra.mxu0 0
  %863 = vmatpush.bf16.msra.mxu0 0
  %864 = vmatpush.bf16.msra.mxu0 0
  %865 = vmatpush.bf16.msra.mxu0 %v254
  %866 = vmatpush.bf16.msra.mxu0 %v252
  %867 = vmatpush.bf16.msra.mxu0 %v250
  %868 = vmatpush.bf16.msra.mxu0 %v248
  %869 = vmatmul.bf16.gmra.mxu0 %v846
  %v870 = vpop.f32.mrf.mxu0
  %v871 = vadd.f32 0.0, %v870
  %v872 = vpop.f32.mrf.mxu0
  %873 = vdwg.mxu0
  %v874 = vadd.f32 %v221, %v858
  %v875 = vadd.f32 %v222, %v871
  %v876 = vxor.u32 %v874, 2147483648
  %v877 = vxor.u32 %v875, 2147483648
  %v878 = vmul.f32 %v876, 1.442695
  %v879 = vpow.pop %v878
  %v880 = vmul.f32 %v877, 1.442695
  %v881 = vpow.pop %v880
  %v882 = vadd.f32 %v879, 1.0
  %v883 = vadd.f32 %v881, 1.0
  %v884 = vrcp.pop %v882
  %v885 = vmul.f32 %v882, %v884
  %v886 = vsub.f32 1.0, %v885
  %v887 = vmul.f32 %v884, %v886
  %v888 = vadd.f32 %v884, %v887
  %vm889 = vweird.f32 %v882
  %vm890 = vweird.f32 %v884
  %vm891 = vmor %vm889, %vm890
  %v892 = vsel %vm891, %v884, %v888
  %v893 = vand.u32 2147483647, %v882
  %vm894 = vcmp.eq.f32.partialorder %v893, 8.507059e+37
  %v895 = vand.u32 %v882, 2147483648
  %v896 = vor.u32 1.1754944e-38, %v895
  %v897 = vsel %vm894, %v896, %v892
  %v898 = vmul.f32 1.0, %v897
  %v899 = vrcp.pop %v883
  %v900 = vmul.f32 %v883, %v899
  %v901 = vsub.f32 1.0, %v900
  %v902 = vmul.f32 %v899, %v901
  %v903 = vadd.f32 %v899, %v902
  %vm904 = vweird.f32 %v883
  %vm905 = vweird.f32 %v899
  %vm906 = vmor %vm904, %vm905
  %v907 = vsel %vm906, %v899, %v903
  %v908 = vand.u32 2147483647, %v883
  %vm909 = vcmp.eq.f32.partialorder %v908, 8.507059e+37
  %v910 = vand.u32 %v883, 2147483648
  %v911 = vor.u32 1.1754944e-38, %v910
  %v912 = vsel %vm909, %v911, %v907
  %v913 = vmul.f32 1.0, %v912
  %v914 = vtanh.pop %v875
  %v915 = vmul.f32 %v898, %v838
  %v916 = vmul.f32 %v898, %v914
  %918 = vrot.lane.b32.xlu0 %v916, 64
  %v919 = vpop.permute.xlu0 %918
  %v921 = vadd.f32 %v915, %v919
  %v922 = vtanh.pop %v921
  %v923 = vmul.f32 %v913, %v922
  %v925 = vrot.slane %v425, 6
  %v928 = vrot.slane %v508, 4
  %v931 = vrot.slane %v591, 2
  %v934 = vrot.slane %v757, 6
  %v937 = vrot.slane %v840, 4
  %v940 = vrot.slane %v923, 2
  %vm942 = vcmask 1041408
  %v943 = vsel %vm942, %v342, %v925
  %vm944 = vcmask 1043456
  %v945 = vsel %vm944, %v943, %v928
  %vm946 = vcmask 1045504
  %v947 = vsel %vm946, %v945, %v931
  %v948 = vsel %vm942, %v674, %v934
  %v949 = vsel %vm944, %v948, %v937
  %v950 = vsel %vm946, %v949, %v940
  %v951 = vrot.slane %v840, 6
  %v953 = vrot.slane %v757, 4
  %v956 = vrot.slane %v674, 2
  %v958 = vrot.slane %v508, 6
  %v960 = vrot.slane %v425, 4
  %v963 = vrot.slane %v342, 2
  %v965 = vsel %vm942, %v923, %v951
  %v966 = vsel %vm944, %v965, %v953
  %v967 = vsel %vm946, %v966, %v956
  %v968 = vsel %vm942, %v591, %v958
  %v969 = vsel %vm944, %v968, %v960
  %v970 = vsel %vm946, %v969, %v963
  %973 = vrot.lane.b32.xlu0 %v947, 64
  %v974 = vpop.permute.xlu0 %973
  %975 = vrot.lane.b32.xlu0 %v950, 64
  %v976 = vpop.permute.xlu0 %975
  %981 = vrot.lane.b32.xlu0 %v967, 64
  %v982 = vpop.permute.xlu0 %981
  %983 = vrot.lane.b32.xlu0 %v970, 64
  %v984 = vpop.permute.xlu0 %983
  %v987 = vsel %vm69, %v974, %v982
  %v988 = vsel %vm69, %v976, %v984
  %v989 = vmax.f32 %v987, 0.0
  %v990 = vmax.f32 %v988, 0.0
  %v991 = vpack.c.bf16 %v990, %v989
  %v992 = vld [vmem:[%s4] sm:$0xf]
  %v993 = vld [vmem:[%s4 + $0x4] sm:$0xf]
  %v994 = vld [vmem:[%s4 + $0x8] sm:$0xf]
  %v995 = vld [vmem:[%s4 + $0xc] sm:$0xf]
  %v996 = vld [vmem:[%s4 + $0x10] sm:$0xf]
  %v997 = vld [vmem:[%s4 + $0x14] sm:$0xf]
  %v998 = vld [vmem:[%s4 + $0x18] sm:$0xf]
  %v999 = vld [vmem:[%s4 + $0x1c] sm:$0xf]
  %v1000 = vld [vmem:[%s5] sm:$0x1]
  %v1002 = vperm.slane %v1000, 0
  %v1012 = vunpack.c.l.b16 %v992
  %v1013 = vunpack.c.l.b16 %v993
  %v1014 = vunpack.c.l.b16 %v994
  %v1015 = vunpack.c.l.b16 %v995
  %v1016 = vunpack.c.l.b16 %v996
  %v1017 = vunpack.c.l.b16 %v997
  %v1018 = vunpack.c.l.b16 %v998
  %v1019 = vunpack.c.l.b16 %v999
  %v1020 = vpack.c.b16 %v1013, %v1012
  %v1021 = vpack.c.b16 %v1015, %v1014
  %v1022 = vpack.c.b16 %v1017, %v1016
  %v1023 = vpack.c.b16 %v1019, %v1018
  %v1029 = vsel %vm263, %v991, 0
  %1031 = vmatpush.bf16.msra.mxu0 0
  %1032 = vmatpush.bf16.msra.mxu0 0
  %1033 = vmatpush.bf16.msra.mxu0 0
  %1034 = vmatpush.bf16.msra.mxu0 0
  %1035 = vmatpush.bf16.msra.mxu0 %v1023
  %1036 = vmatpush.bf16.msra.mxu0 %v1022
  %1037 = vmatpush.bf16.msra.mxu0 %v1021
  %1038 = vmatpush.bf16.msra.mxu0 %v1020
  %1039 = vmatmul.bf16.gmra.mxu0 %v1029
  %v1040 = vpop.f32.mrf.mxu0
  %v1041 = vadd.f32 %v1002, %v1040
  %v1042 = vpop.f32.mrf.mxu0
  %v1043 = vadd.f32 %v1002, %v1042
  %1044 = vdwg.mxu0
  %v1045 = vmax.f32 %v1041, 0.0
  %v1046 = vmax.f32 %v1043, 0.0
  %v1049 = vrot.slane %v1045, 2
  %v1050 = vrot.slane %v1045, 4
  %v1051 = vrot.slane %v1045, 6
  %v1052 = vrot.slane %v1046, 2
  %v1053 = vrot.slane %v1046, 4
  %v1054 = vrot.slane %v1046, 6
  %vm1061 = vcmask 254976
  %v1062 = vsel %vm1061, %v1045, -inf
  %v1063 = vsel %vm1061, %v1049, -inf
  %v1064 = vsel %vm1061, %v1050, -inf
  %v1065 = vsel %vm1061, %v1051, -inf
  %v1066 = vsel %vm1061, %v1046, -inf
  %v1067 = vmax.f32 %v1062, %v1066
  %v1068 = vsel %vm1061, %v1052, -inf
  %v1069 = vmax.f32 %v1063, %v1068
  %v1070 = vsel %vm1061, %v1053, -inf
  %v1071 = vmax.f32 %v1064, %v1070
  %v1072 = vsel %vm1061, %v1054, -inf
  %v1073 = vmax.f32 %v1065, %v1072
  %v1074 = vmax.f32 %v1067, %v1069
  %v1075 = vmax.f32 %v1071, %v1073
  %v1076 = vmax.f32 %v1074, %v1075
  %v1077 = vld [vmem:[%s6] sm:$0x1]
  %v1079 = vperm.slane %v1077, 0
  %v1081 = vmul.f32 %v1076, %v1079
  %v1082 = vsel %vm1061, %v1081, 0.0
  %1083 = vadd.xlane.f32.xlu0 %v1082
  %v1084 = vpop.xlane.xlu0 %1083
  %v1085 = vld [vmem:[#allocation2] sm:$0x1]
  %v1087 = vperm.slane %v1085, 0
  %v1089 = vadd.f32 %v1084, %v1087
  %v1090 = vxor.u32 %v1089, 2147483648
  %v1091 = vmul.f32 %v1090, 1.442695
  %v1092 = vpow.pop %v1091
  %v1093 = vadd.f32 %v1092, 1.0
  %v1094 = vrcp.pop %v1093
  %v1095 = vmul.f32 %v1093, %v1094
  %v1096 = vsub.f32 1.0, %v1095
  %v1097 = vmul.f32 %v1094, %v1096
  %v1098 = vadd.f32 %v1094, %v1097
  %vm1099 = vweird.f32 %v1093
  %vm1100 = vweird.f32 %v1094
  %vm1101 = vmor %vm1099, %vm1100
  %v1102 = vsel %vm1101, %v1094, %v1098
  %v1103 = vand.u32 2147483647, %v1093
  %vm1104 = vcmp.eq.f32.partialorder %v1103, 8.507059e+37
  %v1105 = vand.u32 %v1093, 2147483648
  %v1106 = vor.u32 1.1754944e-38, %v1105
  %v1107 = vsel %vm1104, %v1106, %v1102
  %v1108 = vmul.f32 1.0, %v1107
  %vm1109 = vcmask 1024
  %1110 = vst.msk [vmem:[%s8] sm:$0x3] %vm1109, %v1108
  // Predicated region
  $region34: #{sentence_match_forward.1} parent=0 // pred_check
    _
  $region35: #{sentence_match_forward.1} parent=0 // pred_check_branch
    %1112 = sbr.rel (0) target = $region37
  $region36: #{sentence_match_forward.1} parent=0 // pred_region
    _
  $region37: #{sentence_match_forward.1} parent=0 // pred_fallthru
    _
  // Predicated region
  $region38: #{sentence_match_forward.1} parent=0 // pred_check
    _
  $region39: #{sentence_match_forward.1} parent=0 // pred_check_branch
    %1114 = sbr.rel (0) target = $region41
  $region40: #{sentence_match_forward.1} parent=0 // pred_region
    _
  $region41: #{sentence_match_forward.1} parent=0 // pred_fallthru
    _

</llo_original>
